<compile_context>
chip_gen: v7x
topology: tpu7x:2x2x1
jax: 0.10.0
libtpu: 0.0.40
codegen_flags: <defaults>
</compile_context>

<pallas_src>
import jax
import jax.numpy as jnp
from jax.experimental import pallas as pl
from jax.experimental.pallas import tpu as pltpu

HIDDEN = 64          # GRU hidden size (from the PyTorch module)
HP = 128             # per-gate lane padding (one full lane tile)
GP = 3 * HP          # padded width of the stacked gates [r | z | n]


def _round_up(n, m):
    return ((n + m - 1) // m) * m


def actor_kernel(x_ref, w_ih_ref, w_hh_ref, b_gi_ref, b_hn_ref,
                 w_fc_ref, b_fc_ref, out_ref, gi_ref):
    # x_ref:   (T, bt, D) f32   time-major input tile (bt is a multiple of 8)
    # w_ih_ref:(D, 3*HP)  bf16  input->gates, gate g lives in lanes [g*HP, g*HP+H)
    # w_hh_ref:(HP, 3*HP) bf16  hidden->gates (rows >= H are zero)
    # b_gi_ref:(1, 3*HP)  f32   b_ih (+ b_hh for r,z) folded into the projection bias
    # b_hn_ref:(1, HP)    f32   hidden bias of the n gate (scaled by r in the loop)
    # w_fc_ref:(HP, AP) bf16, b_fc_ref:(1, AP) f32  final layer (padded bias lanes = -1e30)
    # out_ref: (bt, AP)   f32   softmax probabilities (padded lanes come out as 0)
    # gi_ref:  (T*bt, 3*HP) f32 VMEM scratch holding the hoisted input projection
    T, bt, D = x_ref.shape

    w_ih = w_ih_ref[...]
    w_hh = w_hh_ref[...]
    b_gi = b_gi_ref[...]

    # ---- Fused input projection (independent of h, off the serial chain). ----
    # One long bf16 matmul; the result lives in VMEM scratch, not ~T*48 vregs.
    x2 = x_ref[...].reshape(T * bt, D).astype(jnp.bfloat16)   # layout-preserving merge
    gi_ref[...] = jnp.dot(x2, w_ih, preferred_element_type=jnp.float32) + b_gi

    # Hoist the b_hn broadcast out of the unrolled loop (broadcast_in_dim is not CSE'd).
    b_hn = jnp.broadcast_to(b_hn_ref[...], (bt, HP))

    # ---- Recurrence: fully unrolled (T is small); only h @ W_hh per step on the MXU. ----
    h = jnp.zeros((bt, HP), dtype=jnp.float32)
    for t in range(T):
        gh = jnp.dot(h.astype(jnp.bfloat16), w_hh,
                     preferred_element_type=jnp.float32)
        gi_t = gi_ref[pl.ds(t * bt, bt), :]                    # static, free slice
        r = jax.nn.sigmoid(gi_t[:, 0:HP] + gh[:, 0:HP])        # lane-tile aligned
        z = jax.nn.sigmoid(gi_t[:, HP:2 * HP] + gh[:, HP:2 * HP])
        n = jnp.tanh(gi_t[:, 2 * HP:] + r * (gh[:, 2 * HP:] + b_hn))
        h = (1.0 - z) * n + z * h

    # ---- relu on the last GRU output, final Linear, stable softmax. ----
    h = jnp.maximum(h, 0.0)
    logits = (jnp.dot(h.astype(jnp.bfloat16), w_fc_ref[...],
                      preferred_element_type=jnp.float32)
              + b_fc_ref[...])                    # padded lanes -> -1e30
    m = jnp.max(logits, axis=-1, keepdims=True)
    e = jnp.exp(logits - m)                       # padded lanes underflow to 0
    inv = pl.reciprocal(jnp.sum(e, axis=-1, keepdims=True), approx=True)
    out_ref[...] = e * inv


def actor_forward(x, p, action_dim):
    """x: (B, T, state_dim) float32, batch_first like the PyTorch module."""
    B, T, D = x.shape
    H = HIDDEN
    AP = p["w_fc_p"].shape[1]

    # --- Batch tiling: maximal tiles (shortest serial chain); >=2 tiles once
    #     B is large enough that v7x's second TensorCore is worth feeding. ---
    if B <= 256:
        n_tiles = 1
        bt = _round_up(B, 8)
    else:
        n_tiles = max(2, pl.cdiv(B, 1024))
        bt = _round_up(pl.cdiv(B, n_tiles), 8)
    B_pad = bt * n_tiles

    if B_pad != B:
        x = jnp.pad(x, ((0, B_pad - B), (0, 0), (0, 0)))        # zero rows, sliced off later

    # Tiny time-major transpose so each timestep is one contiguous (bt, D) slab.
    # (Negligible at these sizes; at scale fuse it into the producer.)
    x_tm = jnp.transpose(x, (1, 0, 2))                          # (T, B_pad, D)

    grid = (n_tiles,)

    cost = pl.CostEstimate(
        flops=2 * B_pad * T * (D + H) * 3 * H + 2 * B_pad * H * action_dim,
        transcendentals=3 * B_pad * T * H + B_pad * action_dim,
        bytes_accessed=4 * B_pad * T * D + 4 * B_pad * AP
                       + 2 * (D * GP + HP * GP + HP * AP) + 4 * (GP + HP + AP),
    )

    out = pl.pallas_call(
        actor_kernel,
        out_shape=jax.ShapeDtypeStruct((B_pad, AP), jnp.float32),
        grid=grid,
        in_specs=[
            pl.BlockSpec((T, bt, D), lambda i: (0, i, 0)),          # x (batch-tiled)
            pl.BlockSpec(p["w_ih_p"].shape, lambda i: (0, 0)),      # W_ih (resident, bf16)
            pl.BlockSpec(p["w_hh_p"].shape, lambda i: (0, 0)),      # W_hh (bf16)
            pl.BlockSpec(p["b_gi"].shape, lambda i: (0, 0)),        # folded gi bias (f32)
            pl.BlockSpec(p["b_hn"].shape, lambda i: (0, 0)),        # b_hn (f32)
            pl.BlockSpec(p["w_fc_p"].shape, lambda i: (0, 0)),      # W_fc (bf16)
            pl.BlockSpec(p["b_fc_p"].shape, lambda i: (0, 0)),      # b_fc (f32)
        ],
        out_specs=pl.BlockSpec((bt, AP), lambda i: (i, 0)),
        scratch_shapes=[pltpu.VMEM((T * bt, GP), jnp.float32)],     # hoisted projection
        compiler_params=pltpu.CompilerParams(
            dimension_semantics=("parallel",)),                     # v7x megacore sharding
        cost_estimate=cost,
    )(x_tm, p["w_ih_p"], p["w_hh_p"], p["b_gi"], p["b_hn"],
      p["w_fc_p"], p["b_fc_p"])

    return out[:B, :action_dim]


def init_torch_params(key, state_dim, action_dim):
    """Torch-layout params with uniform(-1/sqrt(H), 1/sqrt(H)) init, gate order [r,z,n]."""
    H = HIDDEN
    k = 1.0 / jnp.sqrt(jnp.float32(H))
    ks = jax.random.split(key, 6)
    return {
        "w_ih": jax.random.uniform(ks[0], (3 * H, state_dim), jnp.float32, -k, k),
        "w_hh": jax.random.uniform(ks[1], (3 * H, H), jnp.float32, -k, k),
        "b_ih": jax.random.uniform(ks[2], (3 * H,), jnp.float32, -k, k),
        "b_hh": jax.random.uniform(ks[3], (3 * H,), jnp.float32, -k, k),
        "w_fc": jax.random.uniform(ks[4], (action_dim, H), jnp.float32, -k, k),
        "b_fc": jax.random.uniform(ks[5], (action_dim,), jnp.float32, -k, k),
    }


def pack_params(tp, action_dim):
    """Repack torch-layout weights into the lane-aligned, gate-padded kernel layout.

    Invariants relied on by the kernel (keep if modifying):
      * W_hh rows >= H, W_fc rows >= H, and all padded bias lanes (except the
        -1e30 logit pad) are exactly zero, so the upper 64 lanes of h stay 0.
      * MXU-facing weights are bf16; biases stay f32 (accumulation is f32).
    """
    H = HIDDEN
    D = tp["w_ih"].shape[1]
    AP = _round_up(action_dim, 128)

    w_ih_t = tp["w_ih"].T          # (D, 3H)
    w_hh_t = tp["w_hh"].T          # (H, 3H)

    w_ih_p = jnp.zeros((D, GP), jnp.float32)
    w_hh_p = jnp.zeros((HP, GP), jnp.float32)
    for g in range(3):
        w_ih_p = w_ih_p.at[:, g * HP:g * HP + H].set(w_ih_t[:, g * H:(g + 1) * H])
        w_hh_p = w_hh_p.at[:H, g * HP:g * HP + H].set(w_hh_t[:, g * H:(g + 1) * H])

    # r/z: fold b_ih + b_hh into the hoisted projection bias.
    # n:   only b_in here; b_hn stays separate (it is scaled by r in the GRU).
    b_gi = jnp.zeros((1, GP), jnp.float32)
    b_gi = b_gi.at[0, 0 * HP:0 * HP + H].set(tp["b_ih"][0:H] + tp["b_hh"][0:H])
    b_gi = b_gi.at[0, 1 * HP:1 * HP + H].set(tp["b_ih"][H:2 * H] + tp["b_hh"][H:2 * H])
    b_gi = b_gi.at[0, 2 * HP:2 * HP + H].set(tp["b_ih"][2 * H:3 * H])
    b_hn = jnp.zeros((1, HP), jnp.float32).at[0, :H].set(tp["b_hh"][2 * H:3 * H])

    w_fc_p = jnp.zeros((HP, AP), jnp.float32).at[:H, :action_dim].set(tp["w_fc"].T)
    # Padded logit lanes get a -1e30 bias so the in-kernel softmax ignores them.
    b_fc_p = jnp.full((1, AP), -1e30, jnp.float32).at[0, :action_dim].set(tp["b_fc"])

    return {"w_ih_p": w_ih_p.astype(jnp.bfloat16),
            "w_hh_p": w_hh_p.astype(jnp.bfloat16),
            "b_gi": b_gi, "b_hn": b_hn,
            "w_fc_p": w_fc_p.astype(jnp.bfloat16),
            "b_fc_p": b_fc_p}


def actor_reference(x, tp):
    """Pure-JAX f32 replica of the PyTorch forward (torch-layout params)."""
    B, T, _ = x.shape
    H = HIDDEN
    h = jnp.zeros((B, H), jnp.float32)
    for t in range(T):
        gi = x[:, t, :] @ tp["w_ih"].T + tp["b_ih"]
        gh = h @ tp["w_hh"].T + tp["b_hh"]
        r = jax.nn.sigmoid(gi[:, :H] + gh[:, :H])
        z = jax.nn.sigmoid(gi[:, H:2 * H] + gh[:, H:2 * H])
        n = jnp.tanh(gi[:, 2 * H:] + r * gh[:, 2 * H:])
        h = (1.0 - z) * n + z * h
    h = jnp.maximum(h, 0.0)
    logits = h @ tp["w_fc"].T + tp["b_fc"]
    return jax.nn.softmax(logits, axis=-1)


if __name__ == "__main__":
    B, T, STATE_DIM, ACTION_DIM = 2, 8, 16, 6

    key = jax.random.PRNGKey(0)
    k_x, k_p = jax.random.split(key)
    x = jax.random.normal(k_x, (B, T, STATE_DIM), jnp.float32)
    torch_params = init_torch_params(k_p, STATE_DIM, ACTION_DIM)
    packed = pack_params(torch_params, ACTION_DIM)

    out = actor_forward(x, packed, ACTION_DIM)
    out = jax.block_until_ready(out)

    ref = actor_reference(x, torch_params)
    assert out.shape == (B, ACTION_DIM)
    # bf16 MXU operands + approx reciprocal -> looser tolerances than pure f32.
    assert jnp.allclose(jnp.sum(out, axis=-1), 1.0, atol=5e-3)
    assert jnp.allclose(out, ref, atol=2e-2, rtol=2e-2), float(jnp.max(jnp.abs(out - ref)))

    print("KERNEL_OK")
</pallas_src>

<mosaic_0001>
module attributes {stable_mosaic.version = 11 : i64} {
  func.func @actor_kernel(%arg0: i32, %arg1: memref<8x8x16xf32, #tpu.memory_space<vmem>>, %arg2: memref<16x384xbf16, #tpu.memory_space<vmem>>, %arg3: memref<128x384xbf16, #tpu.memory_space<vmem>>, %arg4: memref<1x384xf32, #tpu.memory_space<vmem>>, %arg5: memref<1x128xf32, #tpu.memory_space<vmem>>, %arg6: memref<128x128xbf16, #tpu.memory_space<vmem>>, %arg7: memref<1x128xf32, #tpu.memory_space<vmem>>, %arg8: memref<8x128xf32, #tpu.memory_space<vmem>>, %arg9: memref<64x384xf32, #tpu.memory_space<vmem>>) attributes {dimension_semantics = [#tpu.dimension_semantics<parallel>], iteration_bounds = array<i64: 1>, scalar_prefetch = 0 : i64, scratch_operands = 1 : i64, tpu.core_type = #tpu.core_type<tc>, window_params = [{transform_indices = @transform_0, window_bounds = array<i64: 8, 8, 16>}, {pipeline_mode = #tpu.pipeline_mode<synchronous>, transform_indices = @transform_1, window_bounds = array<i64: 16, 384>}, {pipeline_mode = #tpu.pipeline_mode<synchronous>, transform_indices = @transform_2, window_bounds = array<i64: 128, 384>}, {pipeline_mode = #tpu.pipeline_mode<synchronous>, transform_indices = @transform_3, window_bounds = array<i64: 1, 384>}, {pipeline_mode = #tpu.pipeline_mode<synchronous>, transform_indices = @transform_4, window_bounds = array<i64: 1, 128>}, {pipeline_mode = #tpu.pipeline_mode<synchronous>, transform_indices = @transform_5, window_bounds = array<i64: 128, 128>}, {pipeline_mode = #tpu.pipeline_mode<synchronous>, transform_indices = @transform_6, window_bounds = array<i64: 1, 128>}, {transform_indices = @transform_7, window_bounds = array<i64: 8, 128>}]} {
    %c0 = arith.constant 0 : index
    %c0_0 = arith.constant 0 : index
    %0 = vector.load %arg2[%c0, %c0_0] : memref<16x384xbf16, #tpu.memory_space<vmem>>, vector<16x384xbf16>
    %c0_1 = arith.constant 0 : index
    %c0_2 = arith.constant 0 : index
    %1 = vector.load %arg3[%c0_1, %c0_2] : memref<128x384xbf16, #tpu.memory_space<vmem>>, vector<128x384xbf16>
    %c0_3 = arith.constant 0 : index
    %c0_4 = arith.constant 0 : index
    %2 = vector.load %arg4[%c0_3, %c0_4] : memref<1x384xf32, #tpu.memory_space<vmem>>, vector<1x384xf32>
    %c0_5 = arith.constant 0 : index
    %c0_6 = arith.constant 0 : index
    %c0_7 = arith.constant 0 : index
    %3 = vector.load %arg1[%c0_5, %c0_6, %c0_7] : memref<8x8x16xf32, #tpu.memory_space<vmem>>, vector<8x8x16xf32>
    %4 = vector.shape_cast %3 : vector<8x8x16xf32> to vector<64x16xf32>
    %5 = arith.truncf %4 : vector<64x16xf32> to vector<64x16xbf16>
    %cst = arith.constant dense<0.000000e+00> : vector<64x384xf32>
    %6 = tpu.matmul %5, %0, %cst {dimension_numbers = #tpu.dot_dimension_numbers<[1], [0], [0], [1], [0, 0, 1, 1], [], []>} : vector<64x16xbf16>, vector<16x384xbf16>, vector<64x384xf32> -> vector<64x384xf32>
    %7 = vector.broadcast %2 : vector<1x384xf32> to vector<64x384xf32>
    %8 = arith.addf %6, %7 : vector<64x384xf32>
    %c0_8 = arith.constant 0 : index
    %c0_9 = arith.constant 0 : index
    %9 = vector.load %arg9[%c0_8, %c0_9] : memref<64x384xf32, #tpu.memory_space<vmem>>, vector<64x384xf32>
    tpu.vector_store %arg9[%c0_8, %c0_9], %8 {strides = array<i32>} : memref<64x384xf32, #tpu.memory_space<vmem>>, vector<64x384xf32>,
    %c0_10 = arith.constant 0 : index
    %c0_11 = arith.constant 0 : index
    %10 = vector.load %arg5[%c0_10, %c0_11] : memref<1x128xf32, #tpu.memory_space<vmem>>, vector<1x128xf32>
    %11 = vector.shape_cast %10 : vector<1x128xf32> to vector<1x128xf32>
    %12 = vector.broadcast %11 : vector<1x128xf32> to vector<8x128xf32>
    %cst_12 = arith.constant 0.000000e+00 : f32
    %13 = vector.broadcast %cst_12 : f32 to vector<8x128xf32>
    %14 = arith.truncf %13 : vector<8x128xf32> to vector<8x128xbf16>
    %cst_13 = arith.constant dense<0.000000e+00> : vector<8x384xf32>
    %15 = tpu.matmul %14, %1, %cst_13 {dimension_numbers = #tpu.dot_dimension_numbers<[1], [0], [0], [1], [0, 0, 1, 1], [], []>} : vector<8x128xbf16>, vector<128x384xbf16>, vector<8x384xf32> -> vector<8x384xf32>
    %c0_14 = arith.constant 0 : index
    %c0_15 = arith.constant 0 : index
    %16 = vector.load %arg9[%c0_14, %c0_15] : memref<64x384xf32, #tpu.memory_space<vmem>>, vector<8x384xf32>
    %17 = vector.extract_strided_slice %16 {offsets = [0, 0], sizes = [8, 128], strides = [1, 1]} : vector<8x384xf32> to vector<8x128xf32>
    %18 = vector.extract_strided_slice %15 {offsets = [0, 0], sizes = [8, 128], strides = [1, 1]} : vector<8x384xf32> to vector<8x128xf32>
    %19 = arith.addf %17, %18 : vector<8x128xf32>
    %20 = arith.negf %19 : vector<8x128xf32>
    %21 = math.exp %20 : vector<8x128xf32>
    %cst_16 = arith.constant 1.000000e+00 : f32
    %22 = vector.broadcast %cst_16 : f32 to vector<8x128xf32>
    %23 = arith.addf %22, %21 : vector<8x128xf32>
    %24 = arith.divf %22, %23 : vector<8x128xf32>
    %25 = vector.extract_strided_slice %16 {offsets = [0, 128], sizes = [8, 128], strides = [1, 1]} : vector<8x384xf32> to vector<8x128xf32>
    %26 = vector.extract_strided_slice %15 {offsets = [0, 128], sizes = [8, 128], strides = [1, 1]} : vector<8x384xf32> to vector<8x128xf32>
    %27 = arith.addf %25, %26 : vector<8x128xf32>
    %28 = arith.negf %27 : vector<8x128xf32>
    %29 = math.exp %28 : vector<8x128xf32>
    %cst_17 = arith.constant 1.000000e+00 : f32
    %30 = vector.broadcast %cst_17 : f32 to vector<8x128xf32>
    %31 = arith.addf %30, %29 : vector<8x128xf32>
    %32 = arith.divf %30, %31 : vector<8x128xf32>
    %33 = vector.extract_strided_slice %16 {offsets = [0, 256], sizes = [8, 128], strides = [1, 1]} : vector<8x384xf32> to vector<8x128xf32>
    %34 = vector.extract_strided_slice %15 {offsets = [0, 256], sizes = [8, 128], strides = [1, 1]} : vector<8x384xf32> to vector<8x128xf32>
    %35 = arith.addf %34, %12 : vector<8x128xf32>
    %36 = arith.mulf %24, %35 : vector<8x128xf32>
    %37 = arith.addf %33, %36 : vector<8x128xf32>
    %38 = math.tanh %37 : vector<8x128xf32>
    %cst_18 = arith.constant 1.000000e+00 : f32
    %39 = vector.broadcast %cst_18 : f32 to vector<8x128xf32>
    %40 = arith.subf %39, %32 : vector<8x128xf32>
    %41 = arith.mulf %40, %38 : vector<8x128xf32>
    %42 = arith.mulf %32, %13 : vector<8x128xf32>
    %43 = arith.addf %41, %42 : vector<8x128xf32>
    %44 = arith.truncf %43 : vector<8x128xf32> to vector<8x128xbf16>
    %cst_19 = arith.constant dense<0.000000e+00> : vector<8x384xf32>
    %45 = tpu.matmul %44, %1, %cst_19 {dimension_numbers = #tpu.dot_dimension_numbers<[1], [0], [0], [1], [0, 0, 1, 1], [], []>} : vector<8x128xbf16>, vector<128x384xbf16>, vector<8x384xf32> -> vector<8x384xf32>
    %c8 = arith.constant 8 : index
    %c0_20 = arith.constant 0 : index
    %46 = vector.load %arg9[%c8, %c0_20] : memref<64x384xf32, #tpu.memory_space<vmem>>, vector<8x384xf32>
    %47 = vector.extract_strided_slice %46 {offsets = [0, 0], sizes = [8, 128], strides = [1, 1]} : vector<8x384xf32> to vector<8x128xf32>
    %48 = vector.extract_strided_slice %45 {offsets = [0, 0], sizes = [8, 128], strides = [1, 1]} : vector<8x384xf32> to vector<8x128xf32>
    %49 = arith.addf %47, %48 : vector<8x128xf32>
    %50 = arith.negf %49 : vector<8x128xf32>
    %51 = math.exp %50 : vector<8x128xf32>
    %cst_21 = arith.constant 1.000000e+00 : f32
    %52 = vector.broadcast %cst_21 : f32 to vector<8x128xf32>
    %53 = arith.addf %52, %51 : vector<8x128xf32>
    %54 = arith.divf %52, %53 : vector<8x128xf32>
    %55 = vector.extract_strided_slice %46 {offsets = [0, 128], sizes = [8, 128], strides = [1, 1]} : vector<8x384xf32> to vector<8x128xf32>
    %56 = vector.extract_strided_slice %45 {offsets = [0, 128], sizes = [8, 128], strides = [1, 1]} : vector<8x384xf32> to vector<8x128xf32>
    %57 = arith.addf %55, %56 : vector<8x128xf32>
    %58 = arith.negf %57 : vector<8x128xf32>
    %59 = math.exp %58 : vector<8x128xf32>
    %cst_22 = arith.constant 1.000000e+00 : f32
    %60 = vector.broadcast %cst_22 : f32 to vector<8x128xf32>
    %61 = arith.addf %60, %59 : vector<8x128xf32>
    %62 = arith.divf %60, %61 : vector<8x128xf32>
    %63 = vector.extract_strided_slice %46 {offsets = [0, 256], sizes = [8, 128], strides = [1, 1]} : vector<8x384xf32> to vector<8x128xf32>
    %64 = vector.extract_strided_slice %45 {offsets = [0, 256], sizes = [8, 128], strides = [1, 1]} : vector<8x384xf32> to vector<8x128xf32>
    %65 = arith.addf %64, %12 : vector<8x128xf32>
    %66 = arith.mulf %54, %65 : vector<8x128xf32>
    %67 = arith.addf %63, %66 : vector<8x128xf32>
    %68 = math.tanh %67 : vector<8x128xf32>
    %cst_23 = arith.constant 1.000000e+00 : f32
    %69 = vector.broadcast %cst_23 : f32 to vector<8x128xf32>
    %70 = arith.subf %69, %62 : vector<8x128xf32>
    %71 = arith.mulf %70, %68 : vector<8x128xf32>
    %72 = arith.mulf %62, %43 : vector<8x128xf32>
    %73 = arith.addf %71, %72 : vector<8x128xf32>
    %74 = arith.truncf %73 : vector<8x128xf32> to vector<8x128xbf16>
    %cst_24 = arith.constant dense<0.000000e+00> : vector<8x384xf32>
    %75 = tpu.matmul %74, %1, %cst_24 {dimension_numbers = #tpu.dot_dimension_numbers<[1], [0], [0], [1], [0, 0, 1, 1], [], []>} : vector<8x128xbf16>, vector<128x384xbf16>, vector<8x384xf32> -> vector<8x384xf32>
    %c16 = arith.constant 16 : index
    %c0_25 = arith.constant 0 : index
    %76 = vector.load %arg9[%c16, %c0_25] : memref<64x384xf32, #tpu.memory_space<vmem>>, vector<8x384xf32>
    %77 = vector.extract_strided_slice %76 {offsets = [0, 0], sizes = [8, 128], strides = [1, 1]} : vector<8x384xf32> to vector<8x128xf32>
    %78 = vector.extract_strided_slice %75 {offsets = [0, 0], sizes = [8, 128], strides = [1, 1]} : vector<8x384xf32> to vector<8x128xf32>
    %79 = arith.addf %77, %78 : vector<8x128xf32>
    %80 = arith.negf %79 : vector<8x128xf32>
    %81 = math.exp %80 : vector<8x128xf32>
    %cst_26 = arith.constant 1.000000e+00 : f32
    %82 = vector.broadcast %cst_26 : f32 to vector<8x128xf32>
    %83 = arith.addf %82, %81 : vector<8x128xf32>
    %84 = arith.divf %82, %83 : vector<8x128xf32>
    %85 = vector.extract_strided_slice %76 {offsets = [0, 128], sizes = [8, 128], strides = [1, 1]} : vector<8x384xf32> to vector<8x128xf32>
    %86 = vector.extract_strided_slice %75 {offsets = [0, 128], sizes = [8, 128], strides = [1, 1]} : vector<8x384xf32> to vector<8x128xf32>
    %87 = arith.addf %85, %86 : vector<8x128xf32>
    %88 = arith.negf %87 : vector<8x128xf32>
    %89 = math.exp %88 : vector<8x128xf32>
    %cst_27 = arith.constant 1.000000e+00 : f32
    %90 = vector.broadcast %cst_27 : f32 to vector<8x128xf32>
    %91 = arith.addf %90, %89 : vector<8x128xf32>
    %92 = arith.divf %90, %91 : vector<8x128xf32>
    %93 = vector.extract_strided_slice %76 {offsets = [0, 256], sizes = [8, 128], strides = [1, 1]} : vector<8x384xf32> to vector<8x128xf32>
    %94 = vector.extract_strided_slice %75 {offsets = [0, 256], sizes = [8, 128], strides = [1, 1]} : vector<8x384xf32> to vector<8x128xf32>
    %95 = arith.addf %94, %12 : vector<8x128xf32>
    %96 = arith.mulf %84, %95 : vector<8x128xf32>
    %97 = arith.addf %93, %96 : vector<8x128xf32>
    %98 = math.tanh %97 : vector<8x128xf32>
    %cst_28 = arith.constant 1.000000e+00 : f32
    %99 = vector.broadcast %cst_28 : f32 to vector<8x128xf32>
    %100 = arith.subf %99, %92 : vector<8x128xf32>
    %101 = arith.mulf %100, %98 : vector<8x128xf32>
    %102 = arith.mulf %92, %73 : vector<8x128xf32>
    %103 = arith.addf %101, %102 : vector<8x128xf32>
    %104 = arith.truncf %103 : vector<8x128xf32> to vector<8x128xbf16>
    %cst_29 = arith.constant dense<0.000000e+00> : vector<8x384xf32>
    %105 = tpu.matmul %104, %1, %cst_29 {dimension_numbers = #tpu.dot_dimension_numbers<[1], [0], [0], [1], [0, 0, 1, 1], [], []>} : vector<8x128xbf16>, vector<128x384xbf16>, vector<8x384xf32> -> vector<8x384xf32>
    %c24 = arith.constant 24 : index
    %c0_30 = arith.constant 0 : index
    %106 = vector.load %arg9[%c24, %c0_30] : memref<64x384xf32, #tpu.memory_space<vmem>>, vector<8x384xf32>
    %107 = vector.extract_strided_slice %106 {offsets = [0, 0], sizes = [8, 128], strides = [1, 1]} : vector<8x384xf32> to vector<8x128xf32>
    %108 = vector.extract_strided_slice %105 {offsets = [0, 0], sizes = [8, 128], strides = [1, 1]} : vector<8x384xf32> to vector<8x128xf32>
    %109 = arith.addf %107, %108 : vector<8x128xf32>
    %110 = arith.negf %109 : vector<8x128xf32>
    %111 = math.exp %110 : vector<8x128xf32>
    %cst_31 = arith.constant 1.000000e+00 : f32
    %112 = vector.broadcast %cst_31 : f32 to vector<8x128xf32>
    %113 = arith.addf %112, %111 : vector<8x128xf32>
    %114 = arith.divf %112, %113 : vector<8x128xf32>
    %115 = vector.extract_strided_slice %106 {offsets = [0, 128], sizes = [8, 128], strides = [1, 1]} : vector<8x384xf32> to vector<8x128xf32>
    %116 = vector.extract_strided_slice %105 {offsets = [0, 128], sizes = [8, 128], strides = [1, 1]} : vector<8x384xf32> to vector<8x128xf32>
    %117 = arith.addf %115, %116 : vector<8x128xf32>
    %118 = arith.negf %117 : vector<8x128xf32>
    %119 = math.exp %118 : vector<8x128xf32>
    %cst_32 = arith.constant 1.000000e+00 : f32
    %120 = vector.broadcast %cst_32 : f32 to vector<8x128xf32>
    %121 = arith.addf %120, %119 : vector<8x128xf32>
    %122 = arith.divf %120, %121 : vector<8x128xf32>
    %123 = vector.extract_strided_slice %106 {offsets = [0, 256], sizes = [8, 128], strides = [1, 1]} : vector<8x384xf32> to vector<8x128xf32>
    %124 = vector.extract_strided_slice %105 {offsets = [0, 256], sizes = [8, 128], strides = [1, 1]} : vector<8x384xf32> to vector<8x128xf32>
    %125 = arith.addf %124, %12 : vector<8x128xf32>
    %126 = arith.mulf %114, %125 : vector<8x128xf32>
    %127 = arith.addf %123, %126 : vector<8x128xf32>
    %128 = math.tanh %127 : vector<8x128xf32>
    %cst_33 = arith.constant 1.000000e+00 : f32
    %129 = vector.broadcast %cst_33 : f32 to vector<8x128xf32>
    %130 = arith.subf %129, %122 : vector<8x128xf32>
    %131 = arith.mulf %130, %128 : vector<8x128xf32>
    %132 = arith.mulf %122, %103 : vector<8x128xf32>
    %133 = arith.addf %131, %132 : vector<8x128xf32>
    %134 = arith.truncf %133 : vector<8x128xf32> to vector<8x128xbf16>
    %cst_34 = arith.constant dense<0.000000e+00> : vector<8x384xf32>
    %135 = tpu.matmul %134, %1, %cst_34 {dimension_numbers = #tpu.dot_dimension_numbers<[1], [0], [0], [1], [0, 0, 1, 1], [], []>} : vector<8x128xbf16>, vector<128x384xbf16>, vector<8x384xf32> -> vector<8x384xf32>
    %c32 = arith.constant 32 : index
    %c0_35 = arith.constant 0 : index
    %136 = vector.load %arg9[%c32, %c0_35] : memref<64x384xf32, #tpu.memory_space<vmem>>, vector<8x384xf32>
    %137 = vector.extract_strided_slice %136 {offsets = [0, 0], sizes = [8, 128], strides = [1, 1]} : vector<8x384xf32> to vector<8x128xf32>
    %138 = vector.extract_strided_slice %135 {offsets = [0, 0], sizes = [8, 128], strides = [1, 1]} : vector<8x384xf32> to vector<8x128xf32>
    %139 = arith.addf %137, %138 : vector<8x128xf32>
    %140 = arith.negf %139 : vector<8x128xf32>
    %141 = math.exp %140 : vector<8x128xf32>
    %cst_36 = arith.constant 1.000000e+00 : f32
    %142 = vector.broadcast %cst_36 : f32 to vector<8x128xf32>
    %143 = arith.addf %142, %141 : vector<8x128xf32>
    %144 = arith.divf %142, %143 : vector<8x128xf32>
    %145 = vector.extract_strided_slice %136 {offsets = [0, 128], sizes = [8, 128], strides = [1, 1]} : vector<8x384xf32> to vector<8x128xf32>
    %146 = vector.extract_strided_slice %135 {offsets = [0, 128], sizes = [8, 128], strides = [1, 1]} : vector<8x384xf32> to vector<8x128xf32>
    %147 = arith.addf %145, %146 : vector<8x128xf32>
    %148 = arith.negf %147 : vector<8x128xf32>
    %149 = math.exp %148 : vector<8x128xf32>
    %cst_37 = arith.constant 1.000000e+00 : f32
    %150 = vector.broadcast %cst_37 : f32 to vector<8x128xf32>
    %151 = arith.addf %150, %149 : vector<8x128xf32>
    %152 = arith.divf %150, %151 : vector<8x128xf32>
    %153 = vector.extract_strided_slice %136 {offsets = [0, 256], sizes = [8, 128], strides = [1, 1]} : vector<8x384xf32> to vector<8x128xf32>
    %154 = vector.extract_strided_slice %135 {offsets = [0, 256], sizes = [8, 128], strides = [1, 1]} : vector<8x384xf32> to vector<8x128xf32>
    %155 = arith.addf %154, %12 : vector<8x128xf32>
    %156 = arith.mulf %144, %155 : vector<8x128xf32>
    %157 = arith.addf %153, %156 : vector<8x128xf32>
    %158 = math.tanh %157 : vector<8x128xf32>
    %cst_38 = arith.constant 1.000000e+00 : f32
    %159 = vector.broadcast %cst_38 : f32 to vector<8x128xf32>
    %160 = arith.subf %159, %152 : vector<8x128xf32>
    %161 = arith.mulf %160, %158 : vector<8x128xf32>
    %162 = arith.mulf %152, %133 : vector<8x128xf32>
    %163 = arith.addf %161, %162 : vector<8x128xf32>
    %164 = arith.truncf %163 : vector<8x128xf32> to vector<8x128xbf16>
    %cst_39 = arith.constant dense<0.000000e+00> : vector<8x384xf32>
    %165 = tpu.matmul %164, %1, %cst_39 {dimension_numbers = #tpu.dot_dimension_numbers<[1], [0], [0], [1], [0, 0, 1, 1], [], []>} : vector<8x128xbf16>, vector<128x384xbf16>, vector<8x384xf32> -> vector<8x384xf32>
    %c40 = arith.constant 40 : index
    %c0_40 = arith.constant 0 : index
    %166 = vector.load %arg9[%c40, %c0_40] : memref<64x384xf32, #tpu.memory_space<vmem>>, vector<8x384xf32>
    %167 = vector.extract_strided_slice %166 {offsets = [0, 0], sizes = [8, 128], strides = [1, 1]} : vector<8x384xf32> to vector<8x128xf32>
    %168 = vector.extract_strided_slice %165 {offsets = [0, 0], sizes = [8, 128], strides = [1, 1]} : vector<8x384xf32> to vector<8x128xf32>
    %169 = arith.addf %167, %168 : vector<8x128xf32>
    %170 = arith.negf %169 : vector<8x128xf32>
    %171 = math.exp %170 : vector<8x128xf32>
    %cst_41 = arith.constant 1.000000e+00 : f32
    %172 = vector.broadcast %cst_41 : f32 to vector<8x128xf32>
    %173 = arith.addf %172, %171 : vector<8x128xf32>
    %174 = arith.divf %172, %173 : vector<8x128xf32>
    %175 = vector.extract_strided_slice %166 {offsets = [0, 128], sizes = [8, 128], strides = [1, 1]} : vector<8x384xf32> to vector<8x128xf32>
    %176 = vector.extract_strided_slice %165 {offsets = [0, 128], sizes = [8, 128], strides = [1, 1]} : vector<8x384xf32> to vector<8x128xf32>
    %177 = arith.addf %175, %176 : vector<8x128xf32>
    %178 = arith.negf %177 : vector<8x128xf32>
    %179 = math.exp %178 : vector<8x128xf32>
    %cst_42 = arith.constant 1.000000e+00 : f32
    %180 = vector.broadcast %cst_42 : f32 to vector<8x128xf32>
    %181 = arith.addf %180, %179 : vector<8x128xf32>
    %182 = arith.divf %180, %181 : vector<8x128xf32>
    %183 = vector.extract_strided_slice %166 {offsets = [0, 256], sizes = [8, 128], strides = [1, 1]} : vector<8x384xf32> to vector<8x128xf32>
    %184 = vector.extract_strided_slice %165 {offsets = [0, 256], sizes = [8, 128], strides = [1, 1]} : vector<8x384xf32> to vector<8x128xf32>
    %185 = arith.addf %184, %12 : vector<8x128xf32>
    %186 = arith.mulf %174, %185 : vector<8x128xf32>
    %187 = arith.addf %183, %186 : vector<8x128xf32>
    %188 = math.tanh %187 : vector<8x128xf32>
    %cst_43 = arith.constant 1.000000e+00 : f32
    %189 = vector.broadcast %cst_43 : f32 to vector<8x128xf32>
    %190 = arith.subf %189, %182 : vector<8x128xf32>
    %191 = arith.mulf %190, %188 : vector<8x128xf32>
    %192 = arith.mulf %182, %163 : vector<8x128xf32>
    %193 = arith.addf %191, %192 : vector<8x128xf32>
    %194 = arith.truncf %193 : vector<8x128xf32> to vector<8x128xbf16>
    %cst_44 = arith.constant dense<0.000000e+00> : vector<8x384xf32>
    %195 = tpu.matmul %194, %1, %cst_44 {dimension_numbers = #tpu.dot_dimension_numbers<[1], [0], [0], [1], [0, 0, 1, 1], [], []>} : vector<8x128xbf16>, vector<128x384xbf16>, vector<8x384xf32> -> vector<8x384xf32>
    %c48 = arith.constant 48 : index
    %c0_45 = arith.constant 0 : index
    %196 = vector.load %arg9[%c48, %c0_45] : memref<64x384xf32, #tpu.memory_space<vmem>>, vector<8x384xf32>
    %197 = vector.extract_strided_slice %196 {offsets = [0, 0], sizes = [8, 128], strides = [1, 1]} : vector<8x384xf32> to vector<8x128xf32>
    %198 = vector.extract_strided_slice %195 {offsets = [0, 0], sizes = [8, 128], strides = [1, 1]} : vector<8x384xf32> to vector<8x128xf32>
    %199 = arith.addf %197, %198 : vector<8x128xf32>
    %200 = arith.negf %199 : vector<8x128xf32>
    %201 = math.exp %200 : vector<8x128xf32>
    %cst_46 = arith.constant 1.000000e+00 : f32
    %202 = vector.broadcast %cst_46 : f32 to vector<8x128xf32>
    %203 = arith.addf %202, %201 : vector<8x128xf32>
    %204 = arith.divf %202, %203 : vector<8x128xf32>
    %205 = vector.extract_strided_slice %196 {offsets = [0, 128], sizes = [8, 128], strides = [1, 1]} : vector<8x384xf32> to vector<8x128xf32>
    %206 = vector.extract_strided_slice %195 {offsets = [0, 128], sizes = [8, 128], strides = [1, 1]} : vector<8x384xf32> to vector<8x128xf32>
    %207 = arith.addf %205, %206 : vector<8x128xf32>
    %208 = arith.negf %207 : vector<8x128xf32>
    %209 = math.exp %208 : vector<8x128xf32>
    %cst_47 = arith.constant 1.000000e+00 : f32
    %210 = vector.broadcast %cst_47 : f32 to vector<8x128xf32>
    %211 = arith.addf %210, %209 : vector<8x128xf32>
    %212 = arith.divf %210, %211 : vector<8x128xf32>
    %213 = vector.extract_strided_slice %196 {offsets = [0, 256], sizes = [8, 128], strides = [1, 1]} : vector<8x384xf32> to vector<8x128xf32>
    %214 = vector.extract_strided_slice %195 {offsets = [0, 256], sizes = [8, 128], strides = [1, 1]} : vector<8x384xf32> to vector<8x128xf32>
    %215 = arith.addf %214, %12 : vector<8x128xf32>
    %216 = arith.mulf %204, %215 : vector<8x128xf32>
    %217 = arith.addf %213, %216 : vector<8x128xf32>
    %218 = math.tanh %217 : vector<8x128xf32>
    %cst_48 = arith.constant 1.000000e+00 : f32
    %219 = vector.broadcast %cst_48 : f32 to vector<8x128xf32>
    %220 = arith.subf %219, %212 : vector<8x128xf32>
    %221 = arith.mulf %220, %218 : vector<8x128xf32>
    %222 = arith.mulf %212, %193 : vector<8x128xf32>
    %223 = arith.addf %221, %222 : vector<8x128xf32>
    %224 = arith.truncf %223 : vector<8x128xf32> to vector<8x128xbf16>
    %cst_49 = arith.constant dense<0.000000e+00> : vector<8x384xf32>
    %225 = tpu.matmul %224, %1, %cst_49 {dimension_numbers = #tpu.dot_dimension_numbers<[1], [0], [0], [1], [0, 0, 1, 1], [], []>} : vector<8x128xbf16>, vector<128x384xbf16>, vector<8x384xf32> -> vector<8x384xf32>
    %c56 = arith.constant 56 : index
    %c0_50 = arith.constant 0 : index
    %226 = vector.load %arg9[%c56, %c0_50] : memref<64x384xf32, #tpu.memory_space<vmem>>, vector<8x384xf32>
    %227 = vector.extract_strided_slice %226 {offsets = [0, 0], sizes = [8, 128], strides = [1, 1]} : vector<8x384xf32> to vector<8x128xf32>
    %228 = vector.extract_strided_slice %225 {offsets = [0, 0], sizes = [8, 128], strides = [1, 1]} : vector<8x384xf32> to vector<8x128xf32>
    %229 = arith.addf %227, %228 : vector<8x128xf32>
    %230 = arith.negf %229 : vector<8x128xf32>
    %231 = math.exp %230 : vector<8x128xf32>
    %cst_51 = arith.constant 1.000000e+00 : f32
    %232 = vector.broadcast %cst_51 : f32 to vector<8x128xf32>
    %233 = arith.addf %232, %231 : vector<8x128xf32>
    %234 = arith.divf %232, %233 : vector<8x128xf32>
    %235 = vector.extract_strided_slice %226 {offsets = [0, 128], sizes = [8, 128], strides = [1, 1]} : vector<8x384xf32> to vector<8x128xf32>
    %236 = vector.extract_strided_slice %225 {offsets = [0, 128], sizes = [8, 128], strides = [1, 1]} : vector<8x384xf32> to vector<8x128xf32>
    %237 = arith.addf %235, %236 : vector<8x128xf32>
    %238 = arith.negf %237 : vector<8x128xf32>
    %239 = math.exp %238 : vector<8x128xf32>
    %cst_52 = arith.constant 1.000000e+00 : f32
    %240 = vector.broadcast %cst_52 : f32 to vector<8x128xf32>
    %241 = arith.addf %240, %239 : vector<8x128xf32>
    %242 = arith.divf %240, %241 : vector<8x128xf32>
    %243 = vector.extract_strided_slice %226 {offsets = [0, 256], sizes = [8, 128], strides = [1, 1]} : vector<8x384xf32> to vector<8x128xf32>
    %244 = vector.extract_strided_slice %225 {offsets = [0, 256], sizes = [8, 128], strides = [1, 1]} : vector<8x384xf32> to vector<8x128xf32>
    %245 = arith.addf %244, %12 : vector<8x128xf32>
    %246 = arith.mulf %234, %245 : vector<8x128xf32>
    %247 = arith.addf %243, %246 : vector<8x128xf32>
    %248 = math.tanh %247 : vector<8x128xf32>
    %cst_53 = arith.constant 1.000000e+00 : f32
    %249 = vector.broadcast %cst_53 : f32 to vector<8x128xf32>
    %250 = arith.subf %249, %242 : vector<8x128xf32>
    %251 = arith.mulf %250, %248 : vector<8x128xf32>
    %252 = arith.mulf %242, %223 : vector<8x128xf32>
    %253 = arith.addf %251, %252 : vector<8x128xf32>
    %cst_54 = arith.constant 0.000000e+00 : f32
    %254 = vector.broadcast %cst_54 : f32 to vector<8x128xf32>
    %255 = arith.maximumf %253, %254 : vector<8x128xf32>
    %256 = arith.truncf %255 : vector<8x128xf32> to vector<8x128xbf16>
    %c0_55 = arith.constant 0 : index
    %c0_56 = arith.constant 0 : index
    %257 = vector.load %arg6[%c0_55, %c0_56] : memref<128x128xbf16, #tpu.memory_space<vmem>>, vector<128x128xbf16>
    %cst_57 = arith.constant dense<0.000000e+00> : vector<8x128xf32>
    %258 = tpu.matmul %256, %257, %cst_57 {dimension_numbers = #tpu.dot_dimension_numbers<[1], [0], [0], [1], [0, 0, 1, 1], [], []>} : vector<8x128xbf16>, vector<128x128xbf16>, vector<8x128xf32> -> vector<8x128xf32>
    %c0_58 = arith.constant 0 : index
    %c0_59 = arith.constant 0 : index
    %259 = vector.load %arg7[%c0_58, %c0_59] : memref<1x128xf32, #tpu.memory_space<vmem>>, vector<1x128xf32>
    %260 = vector.broadcast %259 : vector<1x128xf32> to vector<8x128xf32>
    %261 = arith.addf %258, %260 : vector<8x128xf32>
    %cst_60 = arith.constant dense<0xFF800000> : vector<8xf32>
    %262 = vector.multi_reduction <maximumf>, %261, %cst_60 [1] : vector<8x128xf32> to vector<8xf32>
    %263 = vector.shape_cast %262 : vector<8xf32> to vector<8x1xf32>
    %264 = vector.broadcast %263 : vector<8x1xf32> to vector<8x128xf32>
    %265 = arith.subf %261, %264 : vector<8x128xf32>
    %266 = math.exp %265 : vector<8x128xf32>
    %cst_61 = arith.constant dense<0.000000e+00> : vector<8xf32>
    %267 = vector.multi_reduction <add>, %266, %cst_61 [1] : vector<8x128xf32> to vector<8xf32>
    %268 = vector.shape_cast %267 : vector<8xf32> to vector<8x1xf32>
    %269 = tpu.reciprocal %268 {approx = true} : vector<8x1xf32> -> vector<8x1xf32>
    %270 = vector.broadcast %269 : vector<8x1xf32> to vector<8x128xf32>
    %271 = arith.mulf %266, %270 : vector<8x128xf32>
    %c0_62 = arith.constant 0 : index
    %c0_63 = arith.constant 0 : index
    %272 = vector.load %arg8[%c0_62, %c0_63] : memref<8x128xf32, #tpu.memory_space<vmem>>, vector<8x128xf32>
    tpu.vector_store %arg8[%c0_62, %c0_63], %271 {strides = array<i32>} : memref<8x128xf32, #tpu.memory_space<vmem>>, vector<8x128xf32>,
    return
  }
  func.func @transform_0(%arg0: i32) -> (i32, i32, i32) {
    %c0_i32 = arith.constant 0 : i32
    %c0_i32_0 = arith.constant 0 : i32
    %c0_i32_1 = arith.constant 0 : i32
    return %c0_i32, %arg0, %c0_i32_0 : i32, i32, i32
  }
  func.func @transform_1(%arg0: i32) -> (i32, i32) {
    %c0_i32 = arith.constant 0 : i32
    %c0_i32_0 = arith.constant 0 : i32
    %c0_i32_1 = arith.constant 0 : i32
    return %c0_i32, %c0_i32_0 : i32, i32
  }
  func.func @transform_2(%arg0: i32) -> (i32, i32) {
    %c0_i32 = arith.constant 0 : i32
    %c0_i32_0 = arith.constant 0 : i32
    %c0_i32_1 = arith.constant 0 : i32
    return %c0_i32, %c0_i32_0 : i32, i32
  }
  func.func @transform_3(%arg0: i32) -> (i32, i32) {
    %c0_i32 = arith.constant 0 : i32
    %c0_i32_0 = arith.constant 0 : i32
    %c0_i32_1 = arith.constant 0 : i32
    return %c0_i32, %c0_i32_0 : i32, i32
  }
  func.func @transform_4(%arg0: i32) -> (i32, i32) {
    %c0_i32 = arith.constant 0 : i32
    %c0_i32_0 = arith.constant 0 : i32
    %c0_i32_1 = arith.constant 0 : i32
    return %c0_i32, %c0_i32_0 : i32, i32
  }
  func.func @transform_5(%arg0: i32) -> (i32, i32) {
    %c0_i32 = arith.constant 0 : i32
    %c0_i32_0 = arith.constant 0 : i32
    %c0_i32_1 = arith.constant 0 : i32
    return %c0_i32, %c0_i32_0 : i32, i32
  }
  func.func @transform_6(%arg0: i32) -> (i32, i32) {
    %c0_i32 = arith.constant 0 : i32
    %c0_i32_0 = arith.constant 0 : i32
    %c0_i32_1 = arith.constant 0 : i32
    return %c0_i32, %c0_i32_0 : i32, i32
  }
  func.func @transform_7(%arg0: i32) -> (i32, i32) {
    %c0_i32 = arith.constant 0 : i32
    %c0_i32_0 = arith.constant 0 : i32
    return %arg0, %c0_i32 : i32, i32
  }
}

</mosaic_0001>

<llo_original>
// kernel: tpu_custom_call.1
$region0: #{tpu_custom_call.1}
  #allocation0 [shape = 'u32[]', space=smem, size = 0x4, offset = 0x4, fixed_abs, tag = 'smem constant byte address 0x4 - core index']
  #allocation1 [shape = 'u32[144,128]{1,0:T(1,128)}', space=vmem, size = 0x12000, scoped, tag = 'internal scratch']
  #allocation2 [shape = 'f32[64,384]{1,0:T(8,128)}', space=vmem, size = 0x18000, scoped, tag = 'scratch operand']
  %s0 = inlined_call_operand.hbm [shape: f32[8,8,16], index: 0, kind: input, shape index: {}]
  %s1 = inlined_call_operand.hbm [shape: bf16[16,384], index: 1, kind: input, shape index: {}]
  %s2 = inlined_call_operand.hbm [shape: bf16[128,384], index: 2, kind: input, shape index: {}]
  %s3 = inlined_call_operand.vmem [shape: f32[1,384], index: 3, kind: input, shape index: {}]
  %s4 = inlined_call_operand.vmem [shape: f32[1,128], index: 4, kind: input, shape index: {}]
  %s5 = inlined_call_operand.hbm [shape: bf16[128,128], index: 5, kind: input, shape index: {}]
  %s6 = inlined_call_operand.vmem [shape: f32[1,128], index: 6, kind: input, shape index: {}]
  %s7 = inlined_call_operand.hbm [shape: f32[8,128], index: 7, kind: output, shape index: {}]
  %s8 = sld [smem:[#allocation0]]
  $region54: #{tpu_custom_call.1} parent=0
    _
  %s10 = ssub.s32 1, %s8
  %s11 = scalar_select 0, %s10, %s8
  $region1: #{tpu_custom_call.1} parent=0
    #allocation3 [shape = 'u8[32768]{0}', space=vmem, size = 0x8000, scoped, tag = 'input window, operand 0, single buffered']
    #allocation4 [shape = 's32[1]{0}', space=sflag, size = 0x4, scoped, tag = 'scoped memory for tpu_custom_call.1']
    #allocation5 [shape = 's32[1]{0}', space=sflag, size = 0x4, scoped, tag = 'scoped memory for tpu_custom_call.1']
    #allocation6 [shape = 'u8[12288]{0}', space=vmem, size = 0x3000, scoped, tag = 'input window, operand 1, single buffered']
    #allocation7 [shape = 's32[1]{0}', space=sflag, size = 0x4, scoped, tag = 'scoped memory for tpu_custom_call.1']
    #allocation8 [shape = 'u8[98304]{0}', space=vmem, size = 0x18000, scoped, tag = 'input window, operand 2, single buffered']
    #allocation9 [shape = 'u8[32768]{0}', space=vmem, size = 0x8000, scoped, tag = 'input window, operand 5, single buffered']
    #allocation10 [shape = 's32[1]{0}', space=sflag, size = 0x4, scoped, tag = 'scoped memory for tpu_custom_call.1']
    #allocation11 [shape = 'u8[4096]{0}', space=vmem, size = 0x1000, scoped, tag = 'output window, operand 0, single buffered']
    %12 = vsyncpa [#allocation4], 0
    %13 = vsyncpa [#allocation7], 0
    %14 = vsyncpa [#allocation10], 0
    %15 = vsyncpa [#allocation5], 0
    // Predicated region
    $region2: #{tpu_custom_call.1} parent=1 // pred_check
      _
    $region3: #{tpu_custom_call.1} parent=1 // pred_check_branch
      %17 = sbr.rel (0) target = $region5
    $region4: #{tpu_custom_call.1} parent=1 // pred_region
      %s19 = ssub.s32 1024, 1024
      %20 = vsyncadd [#allocation4], %s19
      %s21 = sshll.u32 [#allocation3], 4
      %s22 = int_to_ptr.vmem [resolvable:$true] %s21
      %27 = dma.hbm_to_vmem [thread:$0]  %s0, 1024, %s22, [#allocation4], 128, 128, 8
    $region5: #{tpu_custom_call.1} parent=1 // pred_fallthru
      _
    // Predicated region
    $region6: #{tpu_custom_call.1} parent=1 // pred_check
      _
    $region7: #{tpu_custom_call.1} parent=1 // pred_check_branch
      %29 = sbr.rel (0) target = $region9
    $region8: #{tpu_custom_call.1} parent=1 // pred_region
      %s31 = ssub.s32 384, 384
      %32 = vsyncadd [#allocation7], %s31
      %s33 = sshll.u32 [#allocation6], 4
      %s34 = int_to_ptr.vmem [resolvable:$true] %s33
      %39 = dma.hbm_to_vmem [thread:$0]  %s1, 384, %s34, [#allocation7], 192, 192, 12
    $region9: #{tpu_custom_call.1} parent=1 // pred_fallthru
      _
    // Predicated region
    $region10: #{tpu_custom_call.1} parent=1 // pred_check
      _
    $region11: #{tpu_custom_call.1} parent=1 // pred_check_branch
      %41 = sbr.rel (0) target = $region13
    $region12: #{tpu_custom_call.1} parent=1 // pred_region
      %s43 = ssub.s32 3072, 3072
      %44 = vsyncadd [#allocation7], %s43
      %s45 = sshll.u32 [#allocation8], 4
      %s46 = int_to_ptr.vmem [resolvable:$true] %s45
      %51 = dma.hbm_to_vmem [thread:$0]  %s2, 3072, %s46, [#allocation7], 192, 192, 12
    $region13: #{tpu_custom_call.1} parent=1 // pred_fallthru
      _
    // Predicated region
    $region14: #{tpu_custom_call.1} parent=1 // pred_check
      _
    $region15: #{tpu_custom_call.1} parent=1 // pred_check_branch
      %53 = sbr.rel (0) target = $region17
    $region16: #{tpu_custom_call.1} parent=1 // pred_region
      _
    $region17: #{tpu_custom_call.1} parent=1 // pred_fallthru
      _
    // Predicated region
    $region18: #{tpu_custom_call.1} parent=1 // pred_check
      _
    $region19: #{tpu_custom_call.1} parent=1 // pred_check_branch
      %55 = sbr.rel (0) target = $region21
    $region20: #{tpu_custom_call.1} parent=1 // pred_region
      _
    $region21: #{tpu_custom_call.1} parent=1 // pred_fallthru
      _
    // Predicated region
    $region22: #{tpu_custom_call.1} parent=1 // pred_check
      _
    $region23: #{tpu_custom_call.1} parent=1 // pred_check_branch
      %57 = sbr.rel (0) target = $region25
    $region24: #{tpu_custom_call.1} parent=1 // pred_region
      %s59 = ssub.s32 1024, 1024
      %60 = vsyncadd [#allocation10], %s59
      %s61 = sshll.u32 [#allocation9], 4
      %s62 = int_to_ptr.vmem [resolvable:$true] %s61
      %67 = dma.hbm_to_vmem [thread:$0]  %s5, 1024, %s62, [#allocation10], 64, 64, 4
    $region25: #{tpu_custom_call.1} parent=1 // pred_fallthru
      _
    // Predicated region
    $region26: #{tpu_custom_call.1} parent=1 // pred_check
      _
    $region27: #{tpu_custom_call.1} parent=1 // pred_check_branch
      %69 = sbr.rel (0) target = $region29
    $region28: #{tpu_custom_call.1} parent=1 // pred_region
      _
    $region29: #{tpu_custom_call.1} parent=1 // pred_fallthru
      _
    // Predicated region
    $region30: #{tpu_custom_call.1} parent=1 // pred_check
      _
    $region31: #{tpu_custom_call.1} parent=1 // pred_check_branch
      %71 = sbr.rel (0) target = $region33
    $region32: #{tpu_custom_call.1} parent=1 // pred_region
      %72 = dma.done [#allocation4], 1024
    $region33: #{tpu_custom_call.1} parent=1 // pred_fallthru
      _
    // Predicated region
    $region34: #{tpu_custom_call.1} parent=1 // pred_check
      _
    $region35: #{tpu_custom_call.1} parent=1 // pred_check_branch
      %74 = sbr.rel (0) target = $region37
    $region36: #{tpu_custom_call.1} parent=1 // pred_region
      %75 = dma.done [#allocation7], 384
    $region37: #{tpu_custom_call.1} parent=1 // pred_fallthru
      _
    // Predicated region
    $region38: #{tpu_custom_call.1} parent=1 // pred_check
      _
    $region39: #{tpu_custom_call.1} parent=1 // pred_check_branch
      %77 = sbr.rel (0) target = $region41
    $region40: #{tpu_custom_call.1} parent=1 // pred_region
      %78 = dma.done [#allocation7], 3072
    $region41: #{tpu_custom_call.1} parent=1 // pred_fallthru
      _
    // Predicated region
    $region42: #{tpu_custom_call.1} parent=1 // pred_check
      _
    $region43: #{tpu_custom_call.1} parent=1 // pred_check_branch
      %80 = sbr.rel (0) target = $region45
    $region44: #{tpu_custom_call.1} parent=1 // pred_region
      %81 = dma.done [#allocation10], 1024
    $region45: #{tpu_custom_call.1} parent=1 // pred_fallthru
      _
    %v83 = vld [vmem:[#allocation6] sm:$0xff]
    %v84 = vld [vmem:[#allocation6 + $0x8] sm:$0xf]
    %v85 = vld [vmem:[#allocation6 + $0xc] sm:$0xff]
    %v86 = vld [vmem:[#allocation6 + $0x14] sm:$0xf]
    %v87 = vld [vmem:[#allocation8] sm:$0xff]
    %v88 = vld [vmem:[#allocation8 + $0x8] sm:$0xf]
    %v89 = vld [vmem:[#allocation8 + $0xc] sm:$0xff]
    %v90 = vld [vmem:[#allocation8 + $0x14] sm:$0xf]
    %v91 = vld [vmem:[#allocation8 + $0x18] sm:$0xff]
    %v92 = vld [vmem:[#allocation8 + $0x20] sm:$0xf]
    %v93 = vld [vmem:[#allocation8 + $0x24] sm:$0xff]
    %v94 = vld [vmem:[#allocation8 + $0x2c] sm:$0xf]
    %v95 = vld [vmem:[#allocation8 + $0x30] sm:$0xff]
    %v96 = vld [vmem:[#allocation8 + $0x38] sm:$0xf]
    %v97 = vld [vmem:[#allocation8 + $0x3c] sm:$0xff]
    %v98 = vld [vmem:[#allocation8 + $0x44] sm:$0xf]
    %v99 = vld [vmem:[#allocation8 + $0x48] sm:$0xff]
    %v100 = vld [vmem:[#allocation8 + $0x50] sm:$0xf]
    %v101 = vld [vmem:[#allocation8 + $0x54] sm:$0xff]
    %v102 = vld [vmem:[#allocation8 + $0x5c] sm:$0xf]
    %v103 = vld [vmem:[#allocation8 + $0x60] sm:$0xff]
    %v104 = vld [vmem:[#allocation8 + $0x68] sm:$0xf]
    %v105 = vld [vmem:[#allocation8 + $0x6c] sm:$0xff]
    %v106 = vld [vmem:[#allocation8 + $0x74] sm:$0xf]
    %v107 = vld [vmem:[#allocation8 + $0x78] sm:$0xff]
    %v108 = vld [vmem:[#allocation8 + $0x80] sm:$0xf]
    %v109 = vld [vmem:[#allocation8 + $0x84] sm:$0xff]
    %v110 = vld [vmem:[#allocation8 + $0x8c] sm:$0xf]
    %v111 = vld [vmem:[#allocation8 + $0x90] sm:$0xff]
    %v112 = vld [vmem:[#allocation8 + $0x98] sm:$0xf]
    %v113 = vld [vmem:[#allocation8 + $0x9c] sm:$0xff]
    %v114 = vld [vmem:[#allocation8 + $0xa4] sm:$0xf]
    %v115 = vld [vmem:[#allocation8 + $0xa8] sm:$0xff]
    %v116 = vld [vmem:[#allocation8 + $0xb0] sm:$0xf]
    %v117 = vld [vmem:[#allocation8 + $0xb4] sm:$0xff]
    %v118 = vld [vmem:[#allocation8 + $0xbc] sm:$0xf]
    %v119 = vld [vmem:[%s3] sm:$0x7]
    %v120 = vld [vmem:[#allocation3] sm:$0xff]
    %v121 = vld [vmem:[#allocation3 + $0x8] sm:$0xff]
    %v122 = vld [vmem:[#allocation3 + $0x10] sm:$0xff]
    %v123 = vld [vmem:[#allocation3 + $0x18] sm:$0xff]
    %v124 = vld [vmem:[#allocation3 + $0x20] sm:$0xff]
    %v125 = vld [vmem:[#allocation3 + $0x28] sm:$0xff]
    %v126 = vld [vmem:[#allocation3 + $0x30] sm:$0xff]
    %v127 = vld [vmem:[#allocation3 + $0x38] sm:$0xff]
    %v128 = vpack.c.bf16 %v121, %v120
    %v129 = vpack.c.bf16 %v123, %v122
    %v130 = vpack.c.bf16 %v125, %v124
    %v131 = vpack.c.bf16 %v127, %v126
    %v133 = vlaneseq
    %v134 = vshrl.u32 %v133, 7
    %v135 = vsub.s32 0, %v134
    %v136 = vrot.slane %v119, %v135
    %v137 = vlaneseq
    %v138 = vshrl.u32 %v137, 7
    %v139 = vsub.s32 1, %v138
    %v140 = vrot.slane %v119, %v139
    %v141 = vlaneseq
    %v142 = vshrl.u32 %v141, 7
    %v143 = vsub.s32 2, %v142
    %v144 = vrot.slane %v119, %v143
    %v152 = vunpack.c.l.b16 %v83
    %v153 = vunpack.c.h.b16 %v83
    %v154 = vunpack.c.l.b16 %v84
    %v155 = vunpack.c.l.b16 %v85
    %v156 = vunpack.c.h.b16 %v85
    %v157 = vunpack.c.l.b16 %v86
    %v158 = vpack.c.b16 %v155, %v152
    %v159 = vpack.c.b16 %v156, %v153
    %v160 = vpack.c.b16 %v157, %v154
    %vm164 = vcmask 130048
    %v166 = vsel %vm164, %v128, 0
    %v169 = vsel %vm164, %v129, 0
    %v172 = vsel %vm164, %v130, 0
    %v175 = vsel %vm164, %v131, 0
    %177 = vmatprep.subr.bf16.mxu0 %v159
    %178 = vmatpush1.bf16.msra.mxu0 %v158
    %179 = vmatprep.subr.bf16.mxu0 0
    %180 = vmatpush1.bf16.msra.mxu0 0
    %181 = vmatprep.subr.bf16.mxu0 0
    %182 = vmatpush1.bf16.msra.mxu0 0
    %183 = vmatprep.subr.bf16.mxu0 0
    %184 = vmatpush1.bf16.msra.mxu0 0
    %185 = vmatprep.subr.bf16.mxu0 0
    %186 = vmatpush1.bf16.msra.mxu0 0
    %187 = vmatprep.subr.bf16.mxu0 0
    %188 = vmatpush1.bf16.msra.mxu0 0
    %189 = vmatprep.subr.bf16.mxu0 0
    %190 = vmatpush1.bf16.msra.mxu0 0
    %191 = vmatprep.subr.bf16.mxu0 0
    %192 = vmatpush1.bf16.msra.mxu0 0
    %193 = vmatprep.subr.bf16.mxu0 0
    %194 = vmatpush1.bf16.msra.mxu0 0
    %195 = vmatprep.subr.bf16.mxu0 0
    %196 = vmatpush1.bf16.msra.mxu0 0
    %197 = vmatprep.subr.bf16.mxu0 0
    %198 = vmatpush1.bf16.msra.mxu0 0
    %199 = vmatprep.subr.bf16.mxu0 0
    %200 = vmatpush1.bf16.msra.mxu0 0
    %201 = vmatprep.subr.bf16.mxu0 0
    %202 = vmatpush1.bf16.msra.mxu0 0
    %203 = vmatprep.subr.bf16.mxu0 0
    %204 = vmatpush1.bf16.msra.mxu0 0
    %205 = vmatprep.subr.bf16.mxu0 0
    %206 = vmatpush1.bf16.msra.mxu0 0
    %207 = vmatprep.subr.bf16.mxu0 0
    %208 = vmatpush1.bf16.msra.mxu0 0
    %209 = vmatprep.mubr.bf16.mxu0 0
    %210 = vmatmul.mubr.bf16.gmra.mrb[0].mxu0 %v166
    %v211 = vpop.f32.mrb[0].mxu0
    %v212 = vadd.f32 %v136, %v211
    %v213 = vpop.f32.mrb[0].mxu0
    %v214 = vadd.f32 %v140, %v213
    %v215 = vpop.f32.mrb[0].mxu0
    %v216 = vadd.f32 %v136, %v215
    %v217 = vpop.f32.mrb[0].mxu0
    %v218 = vadd.f32 %v140, %v217
    %219 = vmatprep.mubr.bf16.mxu0 0
    %220 = vmatmul.mubr.bf16.gmra.mrb[0].mxu0 %v169
    %v221 = vpop.f32.mrb[0].mxu0
    %v222 = vadd.f32 %v136, %v221
    %v223 = vpop.f32.mrb[0].mxu0
    %v224 = vadd.f32 %v140, %v223
    %v225 = vpop.f32.mrb[0].mxu0
    %v226 = vadd.f32 %v136, %v225
    %v227 = vpop.f32.mrb[0].mxu0
    %v228 = vadd.f32 %v140, %v227
    %229 = vmatprep.mubr.bf16.mxu0 0
    %230 = vmatmul.mubr.bf16.gmra.mrb[0].mxu0 %v172
    %v231 = vpop.f32.mrb[0].mxu0
    %v232 = vadd.f32 %v136, %v231
    %v233 = vpop.f32.mrb[0].mxu0
    %v234 = vadd.f32 %v140, %v233
    %v235 = vpop.f32.mrb[0].mxu0
    %v236 = vadd.f32 %v136, %v235
    %v237 = vpop.f32.mrb[0].mxu0
    %v238 = vadd.f32 %v140, %v237
    %239 = vmatprep.mubr.bf16.mxu0 0
    %240 = vmatmul.mubr.bf16.gmra.mrb[0].mxu0 %v175
    %v241 = vpop.f32.mrb[0].mxu0
    %v242 = vadd.f32 %v136, %v241
    %v243 = vpop.f32.mrb[0].mxu0
    %v244 = vadd.f32 %v140, %v243
    %v245 = vpop.f32.mrb[0].mxu0
    %v246 = vadd.f32 %v136, %v245
    %v247 = vpop.f32.mrb[0].mxu0
    %v248 = vadd.f32 %v140, %v247
    %249 = vdwg.mxu0
    %250 = vmatprep.subr.bf16.mxu0 0
    %251 = vmatpush1.bf16.msra.mxu0 %v160
    %252 = vmatprep.subr.bf16.mxu0 0
    %253 = vmatpush1.bf16.msra.mxu0 0
    %254 = vmatprep.subr.bf16.mxu0 0
    %255 = vmatpush1.bf16.msra.mxu0 0
    %256 = vmatprep.subr.bf16.mxu0 0
    %257 = vmatpush1.bf16.msra.mxu0 0
    %258 = vmatprep.subr.bf16.mxu0 0
    %259 = vmatpush1.bf16.msra.mxu0 0
    %260 = vmatprep.subr.bf16.mxu0 0
    %261 = vmatpush1.bf16.msra.mxu0 0
    %262 = vmatprep.subr.bf16.mxu0 0
    %263 = vmatpush1.bf16.msra.mxu0 0
    %264 = vmatprep.subr.bf16.mxu0 0
    %265 = vmatpush1.bf16.msra.mxu0 0
    %266 = vmatprep.subr.bf16.mxu0 0
    %267 = vmatpush1.bf16.msra.mxu0 0
    %268 = vmatprep.subr.bf16.mxu0 0
    %269 = vmatpush1.bf16.msra.mxu0 0
    %270 = vmatprep.subr.bf16.mxu0 0
    %271 = vmatpush1.bf16.msra.mxu0 0
    %272 = vmatprep.subr.bf16.mxu0 0
    %273 = vmatpush1.bf16.msra.mxu0 0
    %274 = vmatprep.subr.bf16.mxu0 0
    %275 = vmatpush1.bf16.msra.mxu0 0
    %276 = vmatprep.subr.bf16.mxu0 0
    %277 = vmatpush1.bf16.msra.mxu0 0
    %278 = vmatprep.subr.bf16.mxu0 0
    %279 = vmatpush1.bf16.msra.mxu0 0
    %280 = vmatprep.subr.bf16.mxu0 0
    %281 = vmatpush1.bf16.msra.mxu0 0
    %282 = vmatprep.mubr.bf16.mxu0 0
    %283 = vmatmul.mubr.bf16.gmra.mrb[0].mxu0 %v166
    %v284 = vpop.f32.mrb[0].mxu0
    %v285 = vadd.f32 %v144, %v284
    %v286 = vpop.f32.mrb[0].mxu0
    %v287 = vpop.f32.mrb[0].mxu0
    %v288 = vadd.f32 %v144, %v287
    %v289 = vpop.f32.mrb[0].mxu0
    %290 = vmatprep.mubr.bf16.mxu0 0
    %291 = vmatmul.mubr.bf16.gmra.mrb[0].mxu0 %v169
    %v292 = vpop.f32.mrb[0].mxu0
    %v293 = vadd.f32 %v144, %v292
    %v294 = vpop.f32.mrb[0].mxu0
    %v295 = vpop.f32.mrb[0].mxu0
    %v296 = vadd.f32 %v144, %v295
    %v297 = vpop.f32.mrb[0].mxu0
    %298 = vmatprep.mubr.bf16.mxu0 0
    %299 = vmatmul.mubr.bf16.gmra.mrb[0].mxu0 %v172
    %v300 = vpop.f32.mrb[0].mxu0
    %v301 = vadd.f32 %v144, %v300
    %v302 = vpop.f32.mrb[0].mxu0
    %v303 = vpop.f32.mrb[0].mxu0
    %v304 = vadd.f32 %v144, %v303
    %v305 = vpop.f32.mrb[0].mxu0
    %306 = vmatprep.mubr.bf16.mxu0 0
    %307 = vmatmul.mubr.bf16.gmra.mrb[0].mxu0 %v175
    %v308 = vpop.f32.mrb[0].mxu0
    %v309 = vadd.f32 %v144, %v308
    %v310 = vpop.f32.mrb[0].mxu0
    %v311 = vpop.f32.mrb[0].mxu0
    %v312 = vadd.f32 %v144, %v311
    %v313 = vpop.f32.mrb[0].mxu0
    %314 = vdwg.mxu0
    %315 = vst [vmem:[#allocation2] sm:$0xff] %v212
    %316 = vst [vmem:[#allocation2 + $0x8] sm:$0xff] %v214
    %317 = vst [vmem:[#allocation2 + $0x10] sm:$0xff] %v285
    %318 = vst [vmem:[#allocation2 + $0x18] sm:$0xff] %v216
    %319 = vst [vmem:[#allocation2 + $0x20] sm:$0xff] %v218
    %320 = vst [vmem:[#allocation2 + $0x28] sm:$0xff] %v288
    %321 = vst [vmem:[#allocation2 + $0x30] sm:$0xff] %v222
    %322 = vst [vmem:[#allocation2 + $0x38] sm:$0xff] %v224
    %323 = vst [vmem:[#allocation2 + $0x40] sm:$0xff] %v293
    %324 = vst [vmem:[#allocation2 + $0x48] sm:$0xff] %v226
    %325 = vst [vmem:[#allocation2 + $0x50] sm:$0xff] %v228
    %326 = vst [vmem:[#allocation2 + $0x58] sm:$0xff] %v296
    %327 = vst [vmem:[#allocation2 + $0x60] sm:$0xff] %v232
    %328 = vst [vmem:[#allocation2 + $0x68] sm:$0xff] %v234
    %329 = vst [vmem:[#allocation2 + $0x70] sm:$0xff] %v301
    %330 = vst [vmem:[#allocation2 + $0x78] sm:$0xff] %v236
    %331 = vst [vmem:[#allocation2 + $0x80] sm:$0xff] %v238
    %332 = vst [vmem:[#allocation2 + $0x88] sm:$0xff] %v304
    %333 = vst [vmem:[#allocation2 + $0x90] sm:$0xff] %v242
    %334 = vst [vmem:[#allocation2 + $0x98] sm:$0xff] %v244
    %335 = vst [vmem:[#allocation2 + $0xa0] sm:$0xff] %v309
    %336 = vst [vmem:[#allocation2 + $0xa8] sm:$0xff] %v246
    %337 = vst [vmem:[#allocation2 + $0xb0] sm:$0xff] %v248
    %338 = vst [vmem:[#allocation2 + $0xb8] sm:$0xff] %v312
    %v339 = vld [vmem:[%s4] sm:$0x1]
    %v341 = vlaneseq
    %v342 = vshrl.u32 %v341, 7
    %v343 = vsub.s32 0, %v342
    %v344 = vrot.slane %v339, %v343
    %v378 = vunpack.c.l.b16 %v87
    %v379 = vunpack.c.h.b16 %v87
    %v380 = vunpack.c.l.b16 %v88
    %v381 = vunpack.c.l.b16 %v89
    %v382 = vunpack.c.h.b16 %v89
    %v383 = vunpack.c.l.b16 %v90
    %v384 = vunpack.c.l.b16 %v91
    %v385 = vunpack.c.h.b16 %v91
    %v386 = vunpack.c.l.b16 %v92
    %v387 = vunpack.c.l.b16 %v93
    %v388 = vunpack.c.h.b16 %v93
    %v389 = vunpack.c.l.b16 %v94
    %v390 = vunpack.c.l.b16 %v95
    %v391 = vunpack.c.h.b16 %v95
    %v392 = vunpack.c.l.b16 %v96
    %v393 = vunpack.c.l.b16 %v97
    %v394 = vunpack.c.h.b16 %v97
    %v395 = vunpack.c.l.b16 %v98
    %v396 = vunpack.c.l.b16 %v99
    %v397 = vunpack.c.h.b16 %v99
    %v398 = vunpack.c.l.b16 %v100
    %v399 = vunpack.c.l.b16 %v101
    %v400 = vunpack.c.h.b16 %v101
    %v401 = vunpack.c.l.b16 %v102
    %v402 = vunpack.c.l.b16 %v103
    %v403 = vunpack.c.h.b16 %v103
    %v404 = vunpack.c.l.b16 %v104
    %v405 = vunpack.c.l.b16 %v105
    %v406 = vunpack.c.h.b16 %v105
    %v407 = vunpack.c.l.b16 %v106
    %v408 = vunpack.c.l.b16 %v107
    %v409 = vunpack.c.h.b16 %v107
    %v410 = vunpack.c.l.b16 %v108
    %v411 = vunpack.c.l.b16 %v109
    %v412 = vunpack.c.h.b16 %v109
    %v413 = vunpack.c.l.b16 %v110
    %v414 = vunpack.c.l.b16 %v111
    %v415 = vunpack.c.h.b16 %v111
    %v416 = vunpack.c.l.b16 %v112
    %v417 = vunpack.c.l.b16 %v113
    %v418 = vunpack.c.h.b16 %v113
    %v419 = vunpack.c.l.b16 %v114
    %v420 = vunpack.c.l.b16 %v115
    %v421 = vunpack.c.h.b16 %v115
    %v422 = vunpack.c.l.b16 %v116
    %v423 = vunpack.c.l.b16 %v117
    %v424 = vunpack.c.h.b16 %v117
    %v425 = vunpack.c.l.b16 %v118
    %v426 = vpack.c.b16 %v381, %v378
    %v427 = vpack.c.b16 %v382, %v379
    %v428 = vpack.c.b16 %v383, %v380
    %v429 = vpack.c.b16 %v387, %v384
    %v430 = vpack.c.b16 %v388, %v385
    %v431 = vpack.c.b16 %v389, %v386
    %v432 = vpack.c.b16 %v393, %v390
    %v433 = vpack.c.b16 %v394, %v391
    %v434 = vpack.c.b16 %v395, %v392
    %v435 = vpack.c.b16 %v399, %v396
    %v436 = vpack.c.b16 %v400, %v397
    %v437 = vpack.c.b16 %v401, %v398
    %v438 = vpack.c.b16 %v405, %v402
    %v439 = vpack.c.b16 %v406, %v403
    %v440 = vpack.c.b16 %v407, %v404
    %v441 = vpack.c.b16 %v411, %v408
    %v442 = vpack.c.b16 %v412, %v409
    %v443 = vpack.c.b16 %v413, %v410
    %v444 = vpack.c.b16 %v417, %v414
    %v445 = vpack.c.b16 %v418, %v415
    %v446 = vpack.c.b16 %v419, %v416
    %v447 = vpack.c.b16 %v423, %v420
    %v448 = vpack.c.b16 %v424, %v421
    %v449 = vpack.c.b16 %v425, %v422
    %474 = vmatprep.subr.bf16.mxu0 %v427
    %475 = vmatpush1.bf16.msra.mxu0 %v426
    %476 = vmatprep.subr.bf16.mxu0 %v430
    %477 = vmatpush1.bf16.msra.mxu0 %v429
    %478 = vmatprep.subr.bf16.mxu0 %v433
    %479 = vmatpush1.bf16.msra.mxu0 %v432
    %480 = vmatprep.subr.bf16.mxu0 %v436
    %481 = vmatpush1.bf16.msra.mxu0 %v435
    %482 = vmatprep.subr.bf16.mxu0 %v439
    %483 = vmatpush1.bf16.msra.mxu0 %v438
    %484 = vmatprep.subr.bf16.mxu0 %v442
    %485 = vmatpush1.bf16.msra.mxu0 %v441
    %486 = vmatprep.subr.bf16.mxu0 %v445
    %487 = vmatpush1.bf16.msra.mxu0 %v444
    %488 = vmatprep.subr.bf16.mxu0 %v448
    %489 = vmatpush1.bf16.msra.mxu0 %v447
    %490 = vmatprep.subr.bf16.mxu0 0
    %491 = vmatpush1.bf16.msra.mxu0 0
    %492 = vmatprep.subr.bf16.mxu0 0
    %493 = vmatpush1.bf16.msra.mxu0 0
    %494 = vmatprep.subr.bf16.mxu0 0
    %495 = vmatpush1.bf16.msra.mxu0 0
    %496 = vmatprep.subr.bf16.mxu0 0
    %497 = vmatpush1.bf16.msra.mxu0 0
    %498 = vmatprep.subr.bf16.mxu0 0
    %499 = vmatpush1.bf16.msra.mxu0 0
    %500 = vmatprep.subr.bf16.mxu0 0
    %501 = vmatpush1.bf16.msra.mxu0 0
    %502 = vmatprep.subr.bf16.mxu0 0
    %503 = vmatpush1.bf16.msra.mxu0 0
    %504 = vmatprep.subr.bf16.mxu0 0
    %505 = vmatpush1.bf16.msra.mxu0 0
    %506 = vmatprep.mubr.bf16.mxu0 0
    %507 = vmatmul.mubr.bf16.gmra.mrb[0].mxu0 0
    %v508 = vpop.f32.mrb[0].mxu0
    %v509 = vadd.f32 0.0, %v508
    %v510 = vpop.f32.mrb[0].mxu0
    %v511 = vadd.f32 0.0, %v510
    %v512 = vpop.f32.mrb[0].mxu0
    %v513 = vpop.f32.mrb[0].mxu0
    %514 = vdwg.mxu0
    %515 = vmatprep.subr.bf16.mxu0 0
    %516 = vmatpush1.bf16.msra.mxu0 %v428
    %517 = vmatprep.subr.bf16.mxu0 0
    %518 = vmatpush1.bf16.msra.mxu0 %v431
    %519 = vmatprep.subr.bf16.mxu0 0
    %520 = vmatpush1.bf16.msra.mxu0 %v434
    %521 = vmatprep.subr.bf16.mxu0 0
    %522 = vmatpush1.bf16.msra.mxu0 %v437
    %523 = vmatprep.subr.bf16.mxu0 0
    %524 = vmatpush1.bf16.msra.mxu0 %v440
    %525 = vmatprep.subr.bf16.mxu0 0
    %526 = vmatpush1.bf16.msra.mxu0 %v443
    %527 = vmatprep.subr.bf16.mxu0 0
    %528 = vmatpush1.bf16.msra.mxu0 %v446
    %529 = vmatprep.subr.bf16.mxu0 0
    %530 = vmatpush1.bf16.msra.mxu0 %v449
    %531 = vmatprep.subr.bf16.mxu0 0
    %532 = vmatpush1.bf16.msra.mxu0 0
    %533 = vmatprep.subr.bf16.mxu0 0
    %534 = vmatpush1.bf16.msra.mxu0 0
    %535 = vmatprep.subr.bf16.mxu0 0
    %536 = vmatpush1.bf16.msra.mxu0 0
    %537 = vmatprep.subr.bf16.mxu0 0
    %538 = vmatpush1.bf16.msra.mxu0 0
    %539 = vmatprep.subr.bf16.mxu0 0
    %540 = vmatpush1.bf16.msra.mxu0 0
    %541 = vmatprep.subr.bf16.mxu0 0
    %542 = vmatpush1.bf16.msra.mxu0 0
    %543 = vmatprep.subr.bf16.mxu0 0
    %544 = vmatpush1.bf16.msra.mxu0 0
    %545 = vmatprep.subr.bf16.mxu0 0
    %546 = vmatpush1.bf16.msra.mxu0 0
    %547 = vmatprep.mubr.bf16.mxu0 0
    %548 = vmatmul.mubr.bf16.gmra.mrb[0].mxu0 0
    %v549 = vpop.f32.mrb[0].mxu0
    %v550 = vadd.f32 0.0, %v549
    %v551 = vpop.f32.mrb[0].mxu0
    %v552 = vpop.f32.mrb[0].mxu0
    %v553 = vpop.f32.mrb[0].mxu0
    %554 = vdwg.mxu0
    %v555 = vld [vmem:[#allocation2] sm:$0xff]
    %v556 = vld [vmem:[#allocation2 + $0x8] sm:$0xff]
    %v557 = vld [vmem:[#allocation2 + $0x10] sm:$0xff]
    %v558 = vadd.f32 %v555, %v509
    %v559 = vxor.u32 %v558, 2147483648
    %v560 = vmul.f32 %v559, 1.442695
    %v561 = vpow.pop %v560
    %v562 = vadd.f32 %v561, 1.0
    %v563 = vrcp.pop %v562
    %v564 = vmul.f32 1.0, %v563
    %v565 = vadd.f32 %v556, %v511
    %v566 = vxor.u32 %v565, 2147483648
    %v567 = vmul.f32 %v566, 1.442695
    %v568 = vpow.pop %v567
    %v569 = vadd.f32 %v568, 1.0
    %v570 = vrcp.pop %v569
    %v571 = vmul.f32 1.0, %v570
    %v572 = vadd.f32 %v550, %v344
    %v573 = vmul.f32 %v564, %v572
    %v574 = vadd.f32 %v557, %v573
    %v575 = vtanh.pop %v574
    %v576 = vsub.f32 1.0, %v571
    %v577 = vmul.f32 %v576, %v575
    %v578 = vmul.f32 %v571, 0.0
    %v579 = vadd.f32 %v577, %v578
    %v580 = vpack.c.bf16 %v579, %v579
    %581 = vmatprep.subr.bf16.mxu0 %v427
    %582 = vmatpush1.bf16.msra.mxu0 %v426
    %583 = vmatprep.subr.bf16.mxu0 %v430
    %584 = vmatpush1.bf16.msra.mxu0 %v429
    %585 = vmatprep.subr.bf16.mxu0 %v433
    %586 = vmatpush1.bf16.msra.mxu0 %v432
    %587 = vmatprep.subr.bf16.mxu0 %v436
    %588 = vmatpush1.bf16.msra.mxu0 %v435
    %589 = vmatprep.subr.bf16.mxu0 %v439
    %590 = vmatpush1.bf16.msra.mxu0 %v438
    %591 = vmatprep.subr.bf16.mxu0 %v442
    %592 = vmatpush1.bf16.msra.mxu0 %v441
    %593 = vmatprep.subr.bf16.mxu0 %v445
    %594 = vmatpush1.bf16.msra.mxu0 %v444
    %595 = vmatprep.subr.bf16.mxu0 %v448
    %596 = vmatpush1.bf16.msra.mxu0 %v447
    %597 = vmatprep.subr.bf16.mxu0 0
    %598 = vmatpush1.bf16.msra.mxu0 0
    %599 = vmatprep.subr.bf16.mxu0 0
    %600 = vmatpush1.bf16.msra.mxu0 0
    %601 = vmatprep.subr.bf16.mxu0 0
    %602 = vmatpush1.bf16.msra.mxu0 0
    %603 = vmatprep.subr.bf16.mxu0 0
    %604 = vmatpush1.bf16.msra.mxu0 0
    %605 = vmatprep.subr.bf16.mxu0 0
    %606 = vmatpush1.bf16.msra.mxu0 0
    %607 = vmatprep.subr.bf16.mxu0 0
    %608 = vmatpush1.bf16.msra.mxu0 0
    %609 = vmatprep.subr.bf16.mxu0 0
    %610 = vmatpush1.bf16.msra.mxu0 0
    %611 = vmatprep.subr.bf16.mxu0 0
    %612 = vmatpush1.bf16.msra.mxu0 0
    %613 = vmatprep.mubr.bf16.mxu0 0
    %614 = vmatmul.mubr.bf16.gmra.mrb[0].mxu0 %v580
    %v615 = vpop.f32.mrb[0].mxu0
    %v616 = vadd.f32 0.0, %v615
    %v617 = vpop.f32.mrb[0].mxu0
    %v618 = vadd.f32 0.0, %v617
    %v619 = vpop.f32.mrb[0].mxu0
    %v620 = vpop.f32.mrb[0].mxu0
    %621 = vdwg.mxu0
    %622 = vmatprep.subr.bf16.mxu0 0
    %623 = vmatpush1.bf16.msra.mxu0 %v428
    %624 = vmatprep.subr.bf16.mxu0 0
    %625 = vmatpush1.bf16.msra.mxu0 %v431
    %626 = vmatprep.subr.bf16.mxu0 0
    %627 = vmatpush1.bf16.msra.mxu0 %v434
    %628 = vmatprep.subr.bf16.mxu0 0
    %629 = vmatpush1.bf16.msra.mxu0 %v437
    %630 = vmatprep.subr.bf16.mxu0 0
    %631 = vmatpush1.bf16.msra.mxu0 %v440
    %632 = vmatprep.subr.bf16.mxu0 0
    %633 = vmatpush1.bf16.msra.mxu0 %v443
    %634 = vmatprep.subr.bf16.mxu0 0
    %635 = vmatpush1.bf16.msra.mxu0 %v446
    %636 = vmatprep.subr.bf16.mxu0 0
    %637 = vmatpush1.bf16.msra.mxu0 %v449
    %638 = vmatprep.subr.bf16.mxu0 0
    %639 = vmatpush1.bf16.msra.mxu0 0
    %640 = vmatprep.subr.bf16.mxu0 0
    %641 = vmatpush1.bf16.msra.mxu0 0
    %642 = vmatprep.subr.bf16.mxu0 0
    %643 = vmatpush1.bf16.msra.mxu0 0
    %644 = vmatprep.subr.bf16.mxu0 0
    %645 = vmatpush1.bf16.msra.mxu0 0
    %646 = vmatprep.subr.bf16.mxu0 0
    %647 = vmatpush1.bf16.msra.mxu0 0
    %648 = vmatprep.subr.bf16.mxu0 0
    %649 = vmatpush1.bf16.msra.mxu0 0
    %650 = vmatprep.subr.bf16.mxu0 0
    %651 = vmatpush1.bf16.msra.mxu0 0
    %652 = vmatprep.subr.bf16.mxu0 0
    %653 = vmatpush1.bf16.msra.mxu0 0
    %654 = vmatprep.mubr.bf16.mxu0 0
    %655 = vmatmul.mubr.bf16.gmra.mrb[0].mxu0 %v580
    %v656 = vpop.f32.mrb[0].mxu0
    %v657 = vadd.f32 0.0, %v656
    %v658 = vpop.f32.mrb[0].mxu0
    %v659 = vpop.f32.mrb[0].mxu0
    %v660 = vpop.f32.mrb[0].mxu0
    %661 = vdwg.mxu0
    %v662 = vld [vmem:[#allocation2 + $0x18] sm:$0xff]
    %v663 = vld [vmem:[#allocation2 + $0x20] sm:$0xff]
    %v664 = vld [vmem:[#allocation2 + $0x28] sm:$0xff]
    %v665 = vadd.f32 %v662, %v616
    %v666 = vxor.u32 %v665, 2147483648
    %v667 = vmul.f32 %v666, 1.442695
    %v668 = vpow.pop %v667
    %v669 = vadd.f32 %v668, 1.0
    %v670 = vrcp.pop %v669
    %v671 = vmul.f32 1.0, %v670
    %v672 = vadd.f32 %v663, %v618
    %v673 = vxor.u32 %v672, 2147483648
    %v674 = vmul.f32 %v673, 1.442695
    %v675 = vpow.pop %v674
    %v676 = vadd.f32 %v675, 1.0
    %v677 = vrcp.pop %v676
    %v678 = vmul.f32 1.0, %v677
    %v679 = vadd.f32 %v657, %v344
    %v680 = vmul.f32 %v671, %v679
    %v681 = vadd.f32 %v664, %v680
    %v682 = vtanh.pop %v681
    %v683 = vsub.f32 1.0, %v678
    %v684 = vmul.f32 %v683, %v682
    %v685 = vmul.f32 %v678, %v579
    %v686 = vadd.f32 %v684, %v685
    %v687 = vpack.c.bf16 %v686, %v686
    %688 = vmatprep.subr.bf16.mxu0 %v427
    %689 = vmatpush1.bf16.msra.mxu0 %v426
    %690 = vmatprep.subr.bf16.mxu0 %v430
    %691 = vmatpush1.bf16.msra.mxu0 %v429
    %692 = vmatprep.subr.bf16.mxu0 %v433
    %693 = vmatpush1.bf16.msra.mxu0 %v432
    %694 = vmatprep.subr.bf16.mxu0 %v436
    %695 = vmatpush1.bf16.msra.mxu0 %v435
    %696 = vmatprep.subr.bf16.mxu0 %v439
    %697 = vmatpush1.bf16.msra.mxu0 %v438
    %698 = vmatprep.subr.bf16.mxu0 %v442
    %699 = vmatpush1.bf16.msra.mxu0 %v441
    %700 = vmatprep.subr.bf16.mxu0 %v445
    %701 = vmatpush1.bf16.msra.mxu0 %v444
    %702 = vmatprep.subr.bf16.mxu0 %v448
    %703 = vmatpush1.bf16.msra.mxu0 %v447
    %704 = vmatprep.subr.bf16.mxu0 0
    %705 = vmatpush1.bf16.msra.mxu0 0
    %706 = vmatprep.subr.bf16.mxu0 0
    %707 = vmatpush1.bf16.msra.mxu0 0
    %708 = vmatprep.subr.bf16.mxu0 0
    %709 = vmatpush1.bf16.msra.mxu0 0
    %710 = vmatprep.subr.bf16.mxu0 0
    %711 = vmatpush1.bf16.msra.mxu0 0
    %712 = vmatprep.subr.bf16.mxu0 0
    %713 = vmatpush1.bf16.msra.mxu0 0
    %714 = vmatprep.subr.bf16.mxu0 0
    %715 = vmatpush1.bf16.msra.mxu0 0
    %716 = vmatprep.subr.bf16.mxu0 0
    %717 = vmatpush1.bf16.msra.mxu0 0
    %718 = vmatprep.subr.bf16.mxu0 0
    %719 = vmatpush1.bf16.msra.mxu0 0
    %720 = vmatprep.mubr.bf16.mxu0 0
    %721 = vmatmul.mubr.bf16.gmra.mrb[0].mxu0 %v687
    %v722 = vpop.f32.mrb[0].mxu0
    %v723 = vadd.f32 0.0, %v722
    %v724 = vpop.f32.mrb[0].mxu0
    %v725 = vadd.f32 0.0, %v724
    %v726 = vpop.f32.mrb[0].mxu0
    %v727 = vpop.f32.mrb[0].mxu0
    %728 = vdwg.mxu0
    %729 = vmatprep.subr.bf16.mxu0 0
    %730 = vmatpush1.bf16.msra.mxu0 %v428
    %731 = vmatprep.subr.bf16.mxu0 0
    %732 = vmatpush1.bf16.msra.mxu0 %v431
    %733 = vmatprep.subr.bf16.mxu0 0
    %734 = vmatpush1.bf16.msra.mxu0 %v434
    %735 = vmatprep.subr.bf16.mxu0 0
    %736 = vmatpush1.bf16.msra.mxu0 %v437
    %737 = vmatprep.subr.bf16.mxu0 0
    %738 = vmatpush1.bf16.msra.mxu0 %v440
    %739 = vmatprep.subr.bf16.mxu0 0
    %740 = vmatpush1.bf16.msra.mxu0 %v443
    %741 = vmatprep.subr.bf16.mxu0 0
    %742 = vmatpush1.bf16.msra.mxu0 %v446
    %743 = vmatprep.subr.bf16.mxu0 0
    %744 = vmatpush1.bf16.msra.mxu0 %v449
    %745 = vmatprep.subr.bf16.mxu0 0
    %746 = vmatpush1.bf16.msra.mxu0 0
    %747 = vmatprep.subr.bf16.mxu0 0
    %748 = vmatpush1.bf16.msra.mxu0 0
    %749 = vmatprep.subr.bf16.mxu0 0
    %750 = vmatpush1.bf16.msra.mxu0 0
    %751 = vmatprep.subr.bf16.mxu0 0
    %752 = vmatpush1.bf16.msra.mxu0 0
    %753 = vmatprep.subr.bf16.mxu0 0
    %754 = vmatpush1.bf16.msra.mxu0 0
    %755 = vmatprep.subr.bf16.mxu0 0
    %756 = vmatpush1.bf16.msra.mxu0 0
    %757 = vmatprep.subr.bf16.mxu0 0
    %758 = vmatpush1.bf16.msra.mxu0 0
    %759 = vmatprep.subr.bf16.mxu0 0
    %760 = vmatpush1.bf16.msra.mxu0 0
    %761 = vmatprep.mubr.bf16.mxu0 0
    %762 = vmatmul.mubr.bf16.gmra.mrb[0].mxu0 %v687
    %v763 = vpop.f32.mrb[0].mxu0
    %v764 = vadd.f32 0.0, %v763
    %v765 = vpop.f32.mrb[0].mxu0
    %v766 = vpop.f32.mrb[0].mxu0
    %v767 = vpop.f32.mrb[0].mxu0
    %768 = vdwg.mxu0
    %v769 = vld [vmem:[#allocation2 + $0x30] sm:$0xff]
    %v770 = vld [vmem:[#allocation2 + $0x38] sm:$0xff]
    %v771 = vld [vmem:[#allocation2 + $0x40] sm:$0xff]
    %v772 = vadd.f32 %v769, %v723
    %v773 = vxor.u32 %v772, 2147483648
    %v774 = vmul.f32 %v773, 1.442695
    %v775 = vpow.pop %v774
    %v776 = vadd.f32 %v775, 1.0
    %v777 = vrcp.pop %v776
    %v778 = vmul.f32 1.0, %v777
    %v779 = vadd.f32 %v770, %v725
    %v780 = vxor.u32 %v779, 2147483648
    %v781 = vmul.f32 %v780, 1.442695
    %v782 = vpow.pop %v781
    %v783 = vadd.f32 %v782, 1.0
    %v784 = vrcp.pop %v783
    %v785 = vmul.f32 1.0, %v784
    %v786 = vadd.f32 %v764, %v344
    %v787 = vmul.f32 %v778, %v786
    %v788 = vadd.f32 %v771, %v787
    %v789 = vtanh.pop %v788
    %v790 = vsub.f32 1.0, %v785
    %v791 = vmul.f32 %v790, %v789
    %v792 = vmul.f32 %v785, %v686
    %v793 = vadd.f32 %v791, %v792
    %v794 = vpack.c.bf16 %v793, %v793
    %795 = vmatprep.subr.bf16.mxu0 %v427
    %796 = vmatpush1.bf16.msra.mxu0 %v426
    %797 = vmatprep.subr.bf16.mxu0 %v430
    %798 = vmatpush1.bf16.msra.mxu0 %v429
    %799 = vmatprep.subr.bf16.mxu0 %v433
    %800 = vmatpush1.bf16.msra.mxu0 %v432
    %801 = vmatprep.subr.bf16.mxu0 %v436
    %802 = vmatpush1.bf16.msra.mxu0 %v435
    %803 = vmatprep.subr.bf16.mxu0 %v439
    %804 = vmatpush1.bf16.msra.mxu0 %v438
    %805 = vmatprep.subr.bf16.mxu0 %v442
    %806 = vmatpush1.bf16.msra.mxu0 %v441
    %807 = vmatprep.subr.bf16.mxu0 %v445
    %808 = vmatpush1.bf16.msra.mxu0 %v444
    %809 = vmatprep.subr.bf16.mxu0 %v448
    %810 = vmatpush1.bf16.msra.mxu0 %v447
    %811 = vmatprep.subr.bf16.mxu0 0
    %812 = vmatpush1.bf16.msra.mxu0 0
    %813 = vmatprep.subr.bf16.mxu0 0
    %814 = vmatpush1.bf16.msra.mxu0 0
    %815 = vmatprep.subr.bf16.mxu0 0
    %816 = vmatpush1.bf16.msra.mxu0 0
    %817 = vmatprep.subr.bf16.mxu0 0
    %818 = vmatpush1.bf16.msra.mxu0 0
    %819 = vmatprep.subr.bf16.mxu0 0
    %820 = vmatpush1.bf16.msra.mxu0 0
    %821 = vmatprep.subr.bf16.mxu0 0
    %822 = vmatpush1.bf16.msra.mxu0 0
    %823 = vmatprep.subr.bf16.mxu0 0
    %824 = vmatpush1.bf16.msra.mxu0 0
    %825 = vmatprep.subr.bf16.mxu0 0
    %826 = vmatpush1.bf16.msra.mxu0 0
    %827 = vmatprep.mubr.bf16.mxu0 0
    %828 = vmatmul.mubr.bf16.gmra.mrb[0].mxu0 %v794
    %v829 = vpop.f32.mrb[0].mxu0
    %v830 = vadd.f32 0.0, %v829
    %v831 = vpop.f32.mrb[0].mxu0
    %v832 = vadd.f32 0.0, %v831
    %v833 = vpop.f32.mrb[0].mxu0
    %v834 = vpop.f32.mrb[0].mxu0
    %835 = vdwg.mxu0
    %836 = vmatprep.subr.bf16.mxu0 0
    %837 = vmatpush1.bf16.msra.mxu0 %v428
    %838 = vmatprep.subr.bf16.mxu0 0
    %839 = vmatpush1.bf16.msra.mxu0 %v431
    %840 = vmatprep.subr.bf16.mxu0 0
    %841 = vmatpush1.bf16.msra.mxu0 %v434
    %842 = vmatprep.subr.bf16.mxu0 0
    %843 = vmatpush1.bf16.msra.mxu0 %v437
    %844 = vmatprep.subr.bf16.mxu0 0
    %845 = vmatpush1.bf16.msra.mxu0 %v440
    %846 = vmatprep.subr.bf16.mxu0 0
    %847 = vmatpush1.bf16.msra.mxu0 %v443
    %848 = vmatprep.subr.bf16.mxu0 0
    %849 = vmatpush1.bf16.msra.mxu0 %v446
    %850 = vmatprep.subr.bf16.mxu0 0
    %851 = vmatpush1.bf16.msra.mxu0 %v449
    %852 = vmatprep.subr.bf16.mxu0 0
    %853 = vmatpush1.bf16.msra.mxu0 0
    %854 = vmatprep.subr.bf16.mxu0 0
    %855 = vmatpush1.bf16.msra.mxu0 0
    %856 = vmatprep.subr.bf16.mxu0 0
    %857 = vmatpush1.bf16.msra.mxu0 0
    %858 = vmatprep.subr.bf16.mxu0 0
    %859 = vmatpush1.bf16.msra.mxu0 0
    %860 = vmatprep.subr.bf16.mxu0 0
    %861 = vmatpush1.bf16.msra.mxu0 0
    %862 = vmatprep.subr.bf16.mxu0 0
    %863 = vmatpush1.bf16.msra.mxu0 0
    %864 = vmatprep.subr.bf16.mxu0 0
    %865 = vmatpush1.bf16.msra.mxu0 0
    %866 = vmatprep.subr.bf16.mxu0 0
    %867 = vmatpush1.bf16.msra.mxu0 0
    %868 = vmatprep.mubr.bf16.mxu0 0
    %869 = vmatmul.mubr.bf16.gmra.mrb[0].mxu0 %v794
    %v870 = vpop.f32.mrb[0].mxu0
    %v871 = vadd.f32 0.0, %v870
    %v872 = vpop.f32.mrb[0].mxu0
    %v873 = vpop.f32.mrb[0].mxu0
    %v874 = vpop.f32.mrb[0].mxu0
    %875 = vdwg.mxu0
    %v876 = vld [vmem:[#allocation2 + $0x48] sm:$0xff]
    %v877 = vld [vmem:[#allocation2 + $0x50] sm:$0xff]
    %v878 = vld [vmem:[#allocation2 + $0x58] sm:$0xff]
    %v879 = vadd.f32 %v876, %v830
    %v880 = vxor.u32 %v879, 2147483648
    %v881 = vmul.f32 %v880, 1.442695
    %v882 = vpow.pop %v881
    %v883 = vadd.f32 %v882, 1.0
    %v884 = vrcp.pop %v883
    %v885 = vmul.f32 1.0, %v884
    %v886 = vadd.f32 %v877, %v832
    %v887 = vxor.u32 %v886, 2147483648
    %v888 = vmul.f32 %v887, 1.442695
    %v889 = vpow.pop %v888
    %v890 = vadd.f32 %v889, 1.0
    %v891 = vrcp.pop %v890
    %v892 = vmul.f32 1.0, %v891
    %v893 = vadd.f32 %v871, %v344
    %v894 = vmul.f32 %v885, %v893
    %v895 = vadd.f32 %v878, %v894
    %v896 = vtanh.pop %v895
    %v897 = vsub.f32 1.0, %v892
    %v898 = vmul.f32 %v897, %v896
    %v899 = vmul.f32 %v892, %v793
    %v900 = vadd.f32 %v898, %v899
    %v901 = vpack.c.bf16 %v900, %v900
    %902 = vmatprep.subr.bf16.mxu0 %v427
    %903 = vmatpush1.bf16.msra.mxu0 %v426
    %904 = vmatprep.subr.bf16.mxu0 %v430
    %905 = vmatpush1.bf16.msra.mxu0 %v429
    %906 = vmatprep.subr.bf16.mxu0 %v433
    %907 = vmatpush1.bf16.msra.mxu0 %v432
    %908 = vmatprep.subr.bf16.mxu0 %v436
    %909 = vmatpush1.bf16.msra.mxu0 %v435
    %910 = vmatprep.subr.bf16.mxu0 %v439
    %911 = vmatpush1.bf16.msra.mxu0 %v438
    %912 = vmatprep.subr.bf16.mxu0 %v442
    %913 = vmatpush1.bf16.msra.mxu0 %v441
    %914 = vmatprep.subr.bf16.mxu0 %v445
    %915 = vmatpush1.bf16.msra.mxu0 %v444
    %916 = vmatprep.subr.bf16.mxu0 %v448
    %917 = vmatpush1.bf16.msra.mxu0 %v447
    %918 = vmatprep.subr.bf16.mxu0 0
    %919 = vmatpush1.bf16.msra.mxu0 0
    %920 = vmatprep.subr.bf16.mxu0 0
    %921 = vmatpush1.bf16.msra.mxu0 0
    %922 = vmatprep.subr.bf16.mxu0 0
    %923 = vmatpush1.bf16.msra.mxu0 0
    %924 = vmatprep.subr.bf16.mxu0 0
    %925 = vmatpush1.bf16.msra.mxu0 0
    %926 = vmatprep.subr.bf16.mxu0 0
    %927 = vmatpush1.bf16.msra.mxu0 0
    %928 = vmatprep.subr.bf16.mxu0 0
    %929 = vmatpush1.bf16.msra.mxu0 0
    %930 = vmatprep.subr.bf16.mxu0 0
    %931 = vmatpush1.bf16.msra.mxu0 0
    %932 = vmatprep.subr.bf16.mxu0 0
    %933 = vmatpush1.bf16.msra.mxu0 0
    %934 = vmatprep.mubr.bf16.mxu0 0
    %935 = vmatmul.mubr.bf16.gmra.mrb[0].mxu0 %v901
    %v936 = vpop.f32.mrb[0].mxu0
    %v937 = vadd.f32 0.0, %v936
    %v938 = vpop.f32.mrb[0].mxu0
    %v939 = vadd.f32 0.0, %v938
    %v940 = vpop.f32.mrb[0].mxu0
    %v941 = vpop.f32.mrb[0].mxu0
    %942 = vdwg.mxu0
    %943 = vmatprep.subr.bf16.mxu0 0
    %944 = vmatpush1.bf16.msra.mxu0 %v428
    %945 = vmatprep.subr.bf16.mxu0 0
    %946 = vmatpush1.bf16.msra.mxu0 %v431
    %947 = vmatprep.subr.bf16.mxu0 0
    %948 = vmatpush1.bf16.msra.mxu0 %v434
    %949 = vmatprep.subr.bf16.mxu0 0
    %950 = vmatpush1.bf16.msra.mxu0 %v437
    %951 = vmatprep.subr.bf16.mxu0 0
    %952 = vmatpush1.bf16.msra.mxu0 %v440
    %953 = vmatprep.subr.bf16.mxu0 0
    %954 = vmatpush1.bf16.msra.mxu0 %v443
    %955 = vmatprep.subr.bf16.mxu0 0
    %956 = vmatpush1.bf16.msra.mxu0 %v446
    %957 = vmatprep.subr.bf16.mxu0 0
    %958 = vmatpush1.bf16.msra.mxu0 %v449
    %959 = vmatprep.subr.bf16.mxu0 0
    %960 = vmatpush1.bf16.msra.mxu0 0
    %961 = vmatprep.subr.bf16.mxu0 0
    %962 = vmatpush1.bf16.msra.mxu0 0
    %963 = vmatprep.subr.bf16.mxu0 0
    %964 = vmatpush1.bf16.msra.mxu0 0
    %965 = vmatprep.subr.bf16.mxu0 0
    %966 = vmatpush1.bf16.msra.mxu0 0
    %967 = vmatprep.subr.bf16.mxu0 0
    %968 = vmatpush1.bf16.msra.mxu0 0
    %969 = vmatprep.subr.bf16.mxu0 0
    %970 = vmatpush1.bf16.msra.mxu0 0
    %971 = vmatprep.subr.bf16.mxu0 0
    %972 = vmatpush1.bf16.msra.mxu0 0
    %973 = vmatprep.subr.bf16.mxu0 0
    %974 = vmatpush1.bf16.msra.mxu0 0
    %975 = vmatprep.mubr.bf16.mxu0 0
    %976 = vmatmul.mubr.bf16.gmra.mrb[0].mxu0 %v901
    %v977 = vpop.f32.mrb[0].mxu0
    %v978 = vadd.f32 0.0, %v977
    %v979 = vpop.f32.mrb[0].mxu0
    %v980 = vpop.f32.mrb[0].mxu0
    %v981 = vpop.f32.mrb[0].mxu0
    %982 = vdwg.mxu0
    %v983 = vld [vmem:[#allocation2 + $0x60] sm:$0xff]
    %v984 = vld [vmem:[#allocation2 + $0x68] sm:$0xff]
    %v985 = vld [vmem:[#allocation2 + $0x70] sm:$0xff]
    %v986 = vadd.f32 %v983, %v937
    %v987 = vxor.u32 %v986, 2147483648
    %v988 = vmul.f32 %v987, 1.442695
    %v989 = vpow.pop %v988
    %v990 = vadd.f32 %v989, 1.0
    %v991 = vrcp.pop %v990
    %v992 = vmul.f32 1.0, %v991
    %v993 = vadd.f32 %v984, %v939
    %v994 = vxor.u32 %v993, 2147483648
    %v995 = vmul.f32 %v994, 1.442695
    %v996 = vpow.pop %v995
    %v997 = vadd.f32 %v996, 1.0
    %v998 = vrcp.pop %v997
    %v999 = vmul.f32 1.0, %v998
    %v1000 = vadd.f32 %v978, %v344
    %v1001 = vmul.f32 %v992, %v1000
    %v1002 = vadd.f32 %v985, %v1001
    %v1003 = vtanh.pop %v1002
    %v1004 = vsub.f32 1.0, %v999
    %v1005 = vmul.f32 %v1004, %v1003
    %v1006 = vmul.f32 %v999, %v900
    %v1007 = vadd.f32 %v1005, %v1006
    %v1008 = vpack.c.bf16 %v1007, %v1007
    %1009 = vmatprep.subr.bf16.mxu0 %v427
    %1010 = vmatpush1.bf16.msra.mxu0 %v426
    %1011 = vmatprep.subr.bf16.mxu0 %v430
    %1012 = vmatpush1.bf16.msra.mxu0 %v429
    %1013 = vmatprep.subr.bf16.mxu0 %v433
    %1014 = vmatpush1.bf16.msra.mxu0 %v432
    %1015 = vmatprep.subr.bf16.mxu0 %v436
    %1016 = vmatpush1.bf16.msra.mxu0 %v435
    %1017 = vmatprep.subr.bf16.mxu0 %v439
    %1018 = vmatpush1.bf16.msra.mxu0 %v438
    %1019 = vmatprep.subr.bf16.mxu0 %v442
    %1020 = vmatpush1.bf16.msra.mxu0 %v441
    %1021 = vmatprep.subr.bf16.mxu0 %v445
    %1022 = vmatpush1.bf16.msra.mxu0 %v444
    %1023 = vmatprep.subr.bf16.mxu0 %v448
    %1024 = vmatpush1.bf16.msra.mxu0 %v447
    %1025 = vmatprep.subr.bf16.mxu0 0
    %1026 = vmatpush1.bf16.msra.mxu0 0
    %1027 = vmatprep.subr.bf16.mxu0 0
    %1028 = vmatpush1.bf16.msra.mxu0 0
    %1029 = vmatprep.subr.bf16.mxu0 0
    %1030 = vmatpush1.bf16.msra.mxu0 0
    %1031 = vmatprep.subr.bf16.mxu0 0
    %1032 = vmatpush1.bf16.msra.mxu0 0
    %1033 = vmatprep.subr.bf16.mxu0 0
    %1034 = vmatpush1.bf16.msra.mxu0 0
    %1035 = vmatprep.subr.bf16.mxu0 0
    %1036 = vmatpush1.bf16.msra.mxu0 0
    %1037 = vmatprep.subr.bf16.mxu0 0
    %1038 = vmatpush1.bf16.msra.mxu0 0
    %1039 = vmatprep.subr.bf16.mxu0 0
    %1040 = vmatpush1.bf16.msra.mxu0 0
    %1041 = vmatprep.mubr.bf16.mxu0 0
    %1042 = vmatmul.mubr.bf16.gmra.mrb[0].mxu0 %v1008
    %v1043 = vpop.f32.mrb[0].mxu0
    %v1044 = vadd.f32 0.0, %v1043
    %v1045 = vpop.f32.mrb[0].mxu0
    %v1046 = vadd.f32 0.0, %v1045
    %v1047 = vpop.f32.mrb[0].mxu0
    %v1048 = vpop.f32.mrb[0].mxu0
    %1049 = vdwg.mxu0
    %1050 = vmatprep.subr.bf16.mxu0 0
    %1051 = vmatpush1.bf16.msra.mxu0 %v428
    %1052 = vmatprep.subr.bf16.mxu0 0
    %1053 = vmatpush1.bf16.msra.mxu0 %v431
    %1054 = vmatprep.subr.bf16.mxu0 0
    %1055 = vmatpush1.bf16.msra.mxu0 %v434
    %1056 = vmatprep.subr.bf16.mxu0 0
    %1057 = vmatpush1.bf16.msra.mxu0 %v437
    %1058 = vmatprep.subr.bf16.mxu0 0
    %1059 = vmatpush1.bf16.msra.mxu0 %v440
    %1060 = vmatprep.subr.bf16.mxu0 0
    %1061 = vmatpush1.bf16.msra.mxu0 %v443
    %1062 = vmatprep.subr.bf16.mxu0 0
    %1063 = vmatpush1.bf16.msra.mxu0 %v446
    %1064 = vmatprep.subr.bf16.mxu0 0
    %1065 = vmatpush1.bf16.msra.mxu0 %v449
    %1066 = vmatprep.subr.bf16.mxu0 0
    %1067 = vmatpush1.bf16.msra.mxu0 0
    %1068 = vmatprep.subr.bf16.mxu0 0
    %1069 = vmatpush1.bf16.msra.mxu0 0
    %1070 = vmatprep.subr.bf16.mxu0 0
    %1071 = vmatpush1.bf16.msra.mxu0 0
    %1072 = vmatprep.subr.bf16.mxu0 0
    %1073 = vmatpush1.bf16.msra.mxu0 0
    %1074 = vmatprep.subr.bf16.mxu0 0
    %1075 = vmatpush1.bf16.msra.mxu0 0
    %1076 = vmatprep.subr.bf16.mxu0 0
    %1077 = vmatpush1.bf16.msra.mxu0 0
    %1078 = vmatprep.subr.bf16.mxu0 0
    %1079 = vmatpush1.bf16.msra.mxu0 0
    %1080 = vmatprep.subr.bf16.mxu0 0
    %1081 = vmatpush1.bf16.msra.mxu0 0
    %1082 = vmatprep.mubr.bf16.mxu0 0
    %1083 = vmatmul.mubr.bf16.gmra.mrb[0].mxu0 %v1008
    %v1084 = vpop.f32.mrb[0].mxu0
    %v1085 = vadd.f32 0.0, %v1084
    %v1086 = vpop.f32.mrb[0].mxu0
    %v1087 = vpop.f32.mrb[0].mxu0
    %v1088 = vpop.f32.mrb[0].mxu0
    %1089 = vdwg.mxu0
    %v1090 = vld [vmem:[#allocation2 + $0x78] sm:$0xff]
    %v1091 = vld [vmem:[#allocation2 + $0x80] sm:$0xff]
    %v1092 = vld [vmem:[#allocation2 + $0x88] sm:$0xff]
    %v1093 = vadd.f32 %v1090, %v1044
    %v1094 = vxor.u32 %v1093, 2147483648
    %v1095 = vmul.f32 %v1094, 1.442695
    %v1096 = vpow.pop %v1095
    %v1097 = vadd.f32 %v1096, 1.0
    %v1098 = vrcp.pop %v1097
    %v1099 = vmul.f32 1.0, %v1098
    %v1100 = vadd.f32 %v1091, %v1046
    %v1101 = vxor.u32 %v1100, 2147483648
    %v1102 = vmul.f32 %v1101, 1.442695
    %v1103 = vpow.pop %v1102
    %v1104 = vadd.f32 %v1103, 1.0
    %v1105 = vrcp.pop %v1104
    %v1106 = vmul.f32 1.0, %v1105
    %v1107 = vadd.f32 %v1085, %v344
    %v1108 = vmul.f32 %v1099, %v1107
    %v1109 = vadd.f32 %v1092, %v1108
    %v1110 = vtanh.pop %v1109
    %v1111 = vsub.f32 1.0, %v1106
    %v1112 = vmul.f32 %v1111, %v1110
    %v1113 = vmul.f32 %v1106, %v1007
    %v1114 = vadd.f32 %v1112, %v1113
    %v1115 = vpack.c.bf16 %v1114, %v1114
    %1116 = vmatprep.subr.bf16.mxu0 %v427
    %1117 = vmatpush1.bf16.msra.mxu0 %v426
    %1118 = vmatprep.subr.bf16.mxu0 %v430
    %1119 = vmatpush1.bf16.msra.mxu0 %v429
    %1120 = vmatprep.subr.bf16.mxu0 %v433
    %1121 = vmatpush1.bf16.msra.mxu0 %v432
    %1122 = vmatprep.subr.bf16.mxu0 %v436
    %1123 = vmatpush1.bf16.msra.mxu0 %v435
    %1124 = vmatprep.subr.bf16.mxu0 %v439
    %1125 = vmatpush1.bf16.msra.mxu0 %v438
    %1126 = vmatprep.subr.bf16.mxu0 %v442
    %1127 = vmatpush1.bf16.msra.mxu0 %v441
    %1128 = vmatprep.subr.bf16.mxu0 %v445
    %1129 = vmatpush1.bf16.msra.mxu0 %v444
    %1130 = vmatprep.subr.bf16.mxu0 %v448
    %1131 = vmatpush1.bf16.msra.mxu0 %v447
    %1132 = vmatprep.subr.bf16.mxu0 0
    %1133 = vmatpush1.bf16.msra.mxu0 0
    %1134 = vmatprep.subr.bf16.mxu0 0
    %1135 = vmatpush1.bf16.msra.mxu0 0
    %1136 = vmatprep.subr.bf16.mxu0 0
    %1137 = vmatpush1.bf16.msra.mxu0 0
    %1138 = vmatprep.subr.bf16.mxu0 0
    %1139 = vmatpush1.bf16.msra.mxu0 0
    %1140 = vmatprep.subr.bf16.mxu0 0
    %1141 = vmatpush1.bf16.msra.mxu0 0
    %1142 = vmatprep.subr.bf16.mxu0 0
    %1143 = vmatpush1.bf16.msra.mxu0 0
    %1144 = vmatprep.subr.bf16.mxu0 0
    %1145 = vmatpush1.bf16.msra.mxu0 0
    %1146 = vmatprep.subr.bf16.mxu0 0
    %1147 = vmatpush1.bf16.msra.mxu0 0
    %1148 = vmatprep.mubr.bf16.mxu0 0
    %1149 = vmatmul.mubr.bf16.gmra.mrb[0].mxu0 %v1115
    %v1150 = vpop.f32.mrb[0].mxu0
    %v1151 = vadd.f32 0.0, %v1150
    %v1152 = vpop.f32.mrb[0].mxu0
    %v1153 = vadd.f32 0.0, %v1152
    %v1154 = vpop.f32.mrb[0].mxu0
    %v1155 = vpop.f32.mrb[0].mxu0
    %1156 = vdwg.mxu0
    %1157 = vmatprep.subr.bf16.mxu0 0
    %1158 = vmatpush1.bf16.msra.mxu0 %v428
    %1159 = vmatprep.subr.bf16.mxu0 0
    %1160 = vmatpush1.bf16.msra.mxu0 %v431
    %1161 = vmatprep.subr.bf16.mxu0 0
    %1162 = vmatpush1.bf16.msra.mxu0 %v434
    %1163 = vmatprep.subr.bf16.mxu0 0
    %1164 = vmatpush1.bf16.msra.mxu0 %v437
    %1165 = vmatprep.subr.bf16.mxu0 0
    %1166 = vmatpush1.bf16.msra.mxu0 %v440
    %1167 = vmatprep.subr.bf16.mxu0 0
    %1168 = vmatpush1.bf16.msra.mxu0 %v443
    %1169 = vmatprep.subr.bf16.mxu0 0
    %1170 = vmatpush1.bf16.msra.mxu0 %v446
    %1171 = vmatprep.subr.bf16.mxu0 0
    %1172 = vmatpush1.bf16.msra.mxu0 %v449
    %1173 = vmatprep.subr.bf16.mxu0 0
    %1174 = vmatpush1.bf16.msra.mxu0 0
    %1175 = vmatprep.subr.bf16.mxu0 0
    %1176 = vmatpush1.bf16.msra.mxu0 0
    %1177 = vmatprep.subr.bf16.mxu0 0
    %1178 = vmatpush1.bf16.msra.mxu0 0
    %1179 = vmatprep.subr.bf16.mxu0 0
    %1180 = vmatpush1.bf16.msra.mxu0 0
    %1181 = vmatprep.subr.bf16.mxu0 0
    %1182 = vmatpush1.bf16.msra.mxu0 0
    %1183 = vmatprep.subr.bf16.mxu0 0
    %1184 = vmatpush1.bf16.msra.mxu0 0
    %1185 = vmatprep.subr.bf16.mxu0 0
    %1186 = vmatpush1.bf16.msra.mxu0 0
    %1187 = vmatprep.subr.bf16.mxu0 0
    %1188 = vmatpush1.bf16.msra.mxu0 0
    %1189 = vmatprep.mubr.bf16.mxu0 0
    %1190 = vmatmul.mubr.bf16.gmra.mrb[0].mxu0 %v1115
    %v1191 = vpop.f32.mrb[0].mxu0
    %v1192 = vadd.f32 0.0, %v1191
    %v1193 = vpop.f32.mrb[0].mxu0
    %v1194 = vpop.f32.mrb[0].mxu0
    %v1195 = vpop.f32.mrb[0].mxu0
    %1196 = vdwg.mxu0
    %v1197 = vld [vmem:[#allocation2 + $0x90] sm:$0xff]
    %v1198 = vld [vmem:[#allocation2 + $0x98] sm:$0xff]
    %v1199 = vld [vmem:[#allocation2 + $0xa0] sm:$0xff]
    %v1200 = vadd.f32 %v1197, %v1151
    %v1201 = vxor.u32 %v1200, 2147483648
    %v1202 = vmul.f32 %v1201, 1.442695
    %v1203 = vpow.pop %v1202
    %v1204 = vadd.f32 %v1203, 1.0
    %v1205 = vrcp.pop %v1204
    %v1206 = vmul.f32 1.0, %v1205
    %v1207 = vadd.f32 %v1198, %v1153
    %v1208 = vxor.u32 %v1207, 2147483648
    %v1209 = vmul.f32 %v1208, 1.442695
    %v1210 = vpow.pop %v1209
    %v1211 = vadd.f32 %v1210, 1.0
    %v1212 = vrcp.pop %v1211
    %v1213 = vmul.f32 1.0, %v1212
    %v1214 = vadd.f32 %v1192, %v344
    %v1215 = vmul.f32 %v1206, %v1214
    %v1216 = vadd.f32 %v1199, %v1215
    %v1217 = vtanh.pop %v1216
    %v1218 = vsub.f32 1.0, %v1213
    %v1219 = vmul.f32 %v1218, %v1217
    %v1220 = vmul.f32 %v1213, %v1114
    %v1221 = vadd.f32 %v1219, %v1220
    %v1222 = vpack.c.bf16 %v1221, %v1221
    %1223 = vmatprep.subr.bf16.mxu0 %v427
    %1224 = vmatpush1.bf16.msra.mxu0 %v426
    %1225 = vmatprep.subr.bf16.mxu0 %v430
    %1226 = vmatpush1.bf16.msra.mxu0 %v429
    %1227 = vmatprep.subr.bf16.mxu0 %v433
    %1228 = vmatpush1.bf16.msra.mxu0 %v432
    %1229 = vmatprep.subr.bf16.mxu0 %v436
    %1230 = vmatpush1.bf16.msra.mxu0 %v435
    %1231 = vmatprep.subr.bf16.mxu0 %v439
    %1232 = vmatpush1.bf16.msra.mxu0 %v438
    %1233 = vmatprep.subr.bf16.mxu0 %v442
    %1234 = vmatpush1.bf16.msra.mxu0 %v441
    %1235 = vmatprep.subr.bf16.mxu0 %v445
    %1236 = vmatpush1.bf16.msra.mxu0 %v444
    %1237 = vmatprep.subr.bf16.mxu0 %v448
    %1238 = vmatpush1.bf16.msra.mxu0 %v447
    %1239 = vmatprep.subr.bf16.mxu0 0
    %1240 = vmatpush1.bf16.msra.mxu0 0
    %1241 = vmatprep.subr.bf16.mxu0 0
    %1242 = vmatpush1.bf16.msra.mxu0 0
    %1243 = vmatprep.subr.bf16.mxu0 0
    %1244 = vmatpush1.bf16.msra.mxu0 0
    %1245 = vmatprep.subr.bf16.mxu0 0
    %1246 = vmatpush1.bf16.msra.mxu0 0
    %1247 = vmatprep.subr.bf16.mxu0 0
    %1248 = vmatpush1.bf16.msra.mxu0 0
    %1249 = vmatprep.subr.bf16.mxu0 0
    %1250 = vmatpush1.bf16.msra.mxu0 0
    %1251 = vmatprep.subr.bf16.mxu0 0
    %1252 = vmatpush1.bf16.msra.mxu0 0
    %1253 = vmatprep.subr.bf16.mxu0 0
    %1254 = vmatpush1.bf16.msra.mxu0 0
    %1255 = vmatprep.mubr.bf16.mxu0 0
    %1256 = vmatmul.mubr.bf16.gmra.mrb[0].mxu0 %v1222
    %v1257 = vpop.f32.mrb[0].mxu0
    %v1258 = vadd.f32 0.0, %v1257
    %v1259 = vpop.f32.mrb[0].mxu0
    %v1260 = vadd.f32 0.0, %v1259
    %v1261 = vpop.f32.mrb[0].mxu0
    %v1262 = vpop.f32.mrb[0].mxu0
    %1263 = vdwg.mxu0
    %1264 = vmatprep.subr.bf16.mxu0 0
    %1265 = vmatpush1.bf16.msra.mxu0 %v428
    %1266 = vmatprep.subr.bf16.mxu0 0
    %1267 = vmatpush1.bf16.msra.mxu0 %v431
    %1268 = vmatprep.subr.bf16.mxu0 0
    %1269 = vmatpush1.bf16.msra.mxu0 %v434
    %1270 = vmatprep.subr.bf16.mxu0 0
    %1271 = vmatpush1.bf16.msra.mxu0 %v437
    %1272 = vmatprep.subr.bf16.mxu0 0
    %1273 = vmatpush1.bf16.msra.mxu0 %v440
    %1274 = vmatprep.subr.bf16.mxu0 0
    %1275 = vmatpush1.bf16.msra.mxu0 %v443
    %1276 = vmatprep.subr.bf16.mxu0 0
    %1277 = vmatpush1.bf16.msra.mxu0 %v446
    %1278 = vmatprep.subr.bf16.mxu0 0
    %1279 = vmatpush1.bf16.msra.mxu0 %v449
    %1280 = vmatprep.subr.bf16.mxu0 0
    %1281 = vmatpush1.bf16.msra.mxu0 0
    %1282 = vmatprep.subr.bf16.mxu0 0
    %1283 = vmatpush1.bf16.msra.mxu0 0
    %1284 = vmatprep.subr.bf16.mxu0 0
    %1285 = vmatpush1.bf16.msra.mxu0 0
    %1286 = vmatprep.subr.bf16.mxu0 0
    %1287 = vmatpush1.bf16.msra.mxu0 0
    %1288 = vmatprep.subr.bf16.mxu0 0
    %1289 = vmatpush1.bf16.msra.mxu0 0
    %1290 = vmatprep.subr.bf16.mxu0 0
    %1291 = vmatpush1.bf16.msra.mxu0 0
    %1292 = vmatprep.subr.bf16.mxu0 0
    %1293 = vmatpush1.bf16.msra.mxu0 0
    %1294 = vmatprep.subr.bf16.mxu0 0
    %1295 = vmatpush1.bf16.msra.mxu0 0
    %1296 = vmatprep.mubr.bf16.mxu0 0
    %1297 = vmatmul.mubr.bf16.gmra.mrb[0].mxu0 %v1222
    %v1298 = vpop.f32.mrb[0].mxu0
    %v1299 = vadd.f32 0.0, %v1298
    %v1300 = vpop.f32.mrb[0].mxu0
    %v1301 = vpop.f32.mrb[0].mxu0
    %v1302 = vpop.f32.mrb[0].mxu0
    %1303 = vdwg.mxu0
    %v1304 = vld [vmem:[#allocation2 + $0xa8] sm:$0xff]
    %v1305 = vld [vmem:[#allocation2 + $0xb0] sm:$0xff]
    %v1306 = vld [vmem:[#allocation2 + $0xb8] sm:$0xff]
    %v1307 = vadd.f32 %v1304, %v1258
    %v1308 = vxor.u32 %v1307, 2147483648
    %v1309 = vmul.f32 %v1308, 1.442695
    %v1310 = vpow.pop %v1309
    %v1311 = vadd.f32 %v1310, 1.0
    %v1312 = vrcp.pop %v1311
    %v1313 = vmul.f32 1.0, %v1312
    %v1314 = vadd.f32 %v1305, %v1260
    %v1315 = vxor.u32 %v1314, 2147483648
    %v1316 = vmul.f32 %v1315, 1.442695
    %v1317 = vpow.pop %v1316
    %v1318 = vadd.f32 %v1317, 1.0
    %v1319 = vrcp.pop %v1318
    %v1320 = vmul.f32 1.0, %v1319
    %v1321 = vadd.f32 %v1299, %v344
    %v1322 = vmul.f32 %v1313, %v1321
    %v1323 = vadd.f32 %v1306, %v1322
    %v1324 = vtanh.pop %v1323
    %v1325 = vsub.f32 1.0, %v1320
    %v1326 = vmul.f32 %v1325, %v1324
    %v1327 = vmul.f32 %v1320, %v1221
    %v1328 = vadd.f32 %v1326, %v1327
    %v1329 = vmax.f32 %v1328, 0.0
    %v1330 = vpack.c.bf16 %v1329, %v1329
    %v1331 = vld [vmem:[#allocation9] sm:$0xf]
    %v1332 = vld [vmem:[#allocation9 + $0x4] sm:$0xf]
    %v1333 = vld [vmem:[#allocation9 + $0x8] sm:$0xf]
    %v1334 = vld [vmem:[#allocation9 + $0xc] sm:$0xf]
    %v1335 = vld [vmem:[#allocation9 + $0x10] sm:$0xf]
    %v1336 = vld [vmem:[#allocation9 + $0x14] sm:$0xf]
    %v1337 = vld [vmem:[#allocation9 + $0x18] sm:$0xf]
    %v1338 = vld [vmem:[#allocation9 + $0x1c] sm:$0xf]
    %v1339 = vld [vmem:[#allocation9 + $0x20] sm:$0xf]
    %v1340 = vld [vmem:[#allocation9 + $0x24] sm:$0xf]
    %v1341 = vld [vmem:[#allocation9 + $0x28] sm:$0xf]
    %v1342 = vld [vmem:[#allocation9 + $0x2c] sm:$0xf]
    %v1343 = vld [vmem:[#allocation9 + $0x30] sm:$0xf]
    %v1344 = vld [vmem:[#allocation9 + $0x34] sm:$0xf]
    %v1345 = vld [vmem:[#allocation9 + $0x38] sm:$0xf]
    %v1346 = vld [vmem:[#allocation9 + $0x3c] sm:$0xf]
    %v1347 = vld [vmem:[%s6] sm:$0x1]
    %v1349 = vlaneseq
    %v1350 = vshrl.u32 %v1349, 7
    %v1351 = vsub.s32 0, %v1350
    %v1352 = vrot.slane %v1347, %v1351
    %v1370 = vunpack.c.l.b16 %v1331
    %v1371 = vunpack.c.l.b16 %v1332
    %v1372 = vunpack.c.l.b16 %v1333
    %v1373 = vunpack.c.l.b16 %v1334
    %v1374 = vunpack.c.l.b16 %v1335
    %v1375 = vunpack.c.l.b16 %v1336
    %v1376 = vunpack.c.l.b16 %v1337
    %v1377 = vunpack.c.l.b16 %v1338
    %v1378 = vunpack.c.l.b16 %v1339
    %v1379 = vunpack.c.l.b16 %v1340
    %v1380 = vunpack.c.l.b16 %v1341
    %v1381 = vunpack.c.l.b16 %v1342
    %v1382 = vunpack.c.l.b16 %v1343
    %v1383 = vunpack.c.l.b16 %v1344
    %v1384 = vunpack.c.l.b16 %v1345
    %v1385 = vunpack.c.l.b16 %v1346
    %v1386 = vpack.c.b16 %v1371, %v1370
    %v1387 = vpack.c.b16 %v1373, %v1372
    %v1388 = vpack.c.b16 %v1375, %v1374
    %v1389 = vpack.c.b16 %v1377, %v1376
    %v1390 = vpack.c.b16 %v1379, %v1378
    %v1391 = vpack.c.b16 %v1381, %v1380
    %v1392 = vpack.c.b16 %v1383, %v1382
    %v1393 = vpack.c.b16 %v1385, %v1384
    %1402 = vmatprep.subr.bf16.mxu0 0
    %1403 = vmatpush1.bf16.msra.mxu0 %v1386
    %1404 = vmatprep.subr.bf16.mxu0 0
    %1405 = vmatpush1.bf16.msra.mxu0 %v1387
    %1406 = vmatprep.subr.bf16.mxu0 0
    %1407 = vmatpush1.bf16.msra.mxu0 %v1388
    %1408 = vmatprep.subr.bf16.mxu0 0
    %1409 = vmatpush1.bf16.msra.mxu0 %v1389
    %1410 = vmatprep.subr.bf16.mxu0 0
    %1411 = vmatpush1.bf16.msra.mxu0 %v1390
    %1412 = vmatprep.subr.bf16.mxu0 0
    %1413 = vmatpush1.bf16.msra.mxu0 %v1391
    %1414 = vmatprep.subr.bf16.mxu0 0
    %1415 = vmatpush1.bf16.msra.mxu0 %v1392
    %1416 = vmatprep.subr.bf16.mxu0 0
    %1417 = vmatpush1.bf16.msra.mxu0 %v1393
    %1418 = vmatprep.subr.bf16.mxu0 0
    %1419 = vmatpush1.bf16.msra.mxu0 0
    %1420 = vmatprep.subr.bf16.mxu0 0
    %1421 = vmatpush1.bf16.msra.mxu0 0
    %1422 = vmatprep.subr.bf16.mxu0 0
    %1423 = vmatpush1.bf16.msra.mxu0 0
    %1424 = vmatprep.subr.bf16.mxu0 0
    %1425 = vmatpush1.bf16.msra.mxu0 0
    %1426 = vmatprep.subr.bf16.mxu0 0
    %1427 = vmatpush1.bf16.msra.mxu0 0
    %1428 = vmatprep.subr.bf16.mxu0 0
    %1429 = vmatpush1.bf16.msra.mxu0 0
    %1430 = vmatprep.subr.bf16.mxu0 0
    %1431 = vmatpush1.bf16.msra.mxu0 0
    %1432 = vmatprep.subr.bf16.mxu0 0
    %1433 = vmatpush1.bf16.msra.mxu0 0
    %1434 = vmatprep.mubr.bf16.mxu0 0
    %1435 = vmatmul.mubr.bf16.gmra.mrb[0].mxu0 %v1330
    %v1436 = vpop.f32.mrb[0].mxu0
    %v1437 = vadd.f32 %v1352, %v1436
    %v1438 = vpop.f32.mrb[0].mxu0
    %v1439 = vpop.f32.mrb[0].mxu0
    %v1440 = vpop.f32.mrb[0].mxu0
    %1441 = vdwg.mxu0
    %1442 = vmax.xlane.f32.xlu0 %v1437
    %v1443 = vpop.xlane.xlu0 %1442
    %v1444 = vsub.f32 %v1437, %v1443
    %v1445 = vmul.f32 %v1444, 1.442695
    %v1446 = vpow.pop %v1445
    %1447 = vadd.xlane.f32.xlu0 %v1446
    %v1448 = vpop.xlane.xlu0 %1447
    %v1449 = vrcp.pop %v1448
    %v1450 = vmul.f32 %v1446, %v1449
    %1451 = vst [vmem:[#allocation11] sm:$0xff] %v1450
    // Predicated region
    $region46: #{tpu_custom_call.1} parent=1 // pred_check
      _
    $region47: #{tpu_custom_call.1} parent=1 // pred_check_branch
      %1453 = sbr.rel (0) target = $region49
    $region48: #{tpu_custom_call.1} parent=1 // pred_region
      %s1455 = ssub.s32 128, 128
      %1456 = vsyncadd [#allocation5], %s1455
      %s1458 = sshll.u32 [#allocation11], 4
      %s1459 = int_to_ptr.vmem [resolvable:$true] %s1458
      %1461 = dma.vmem_to_hbm [thread:$0]  %s1459, 128, %s7, [#allocation5]
    $region49: #{tpu_custom_call.1} parent=1 // pred_fallthru
      _
    // Predicated region
    $region50: #{tpu_custom_call.1} parent=1 // pred_check
      _
    $region51: #{tpu_custom_call.1} parent=1 // pred_check_branch
      %1463 = sbr.rel (0) target = $region53
    $region52: #{tpu_custom_call.1} parent=1 // pred_region
      %1464 = dma.done [#allocation5], 128
    $region53: #{tpu_custom_call.1} parent=1 // pred_fallthru
      _
    %1465 = vsyncpa [#allocation4], 1
    %1466 = vsyncpa [#allocation7], 1
    %1467 = vsyncpa [#allocation10], 1
    %1468 = vsyncpa [#allocation5], 1

</llo_original>
